<compile_context>
chip_gen: v5e
topology: v5e:2x2
jax: 0.10.0
libtpu: 0.0.40
codegen_flags: <defaults>
</compile_context>

<pallas_src>
import functools

import numpy as np
import jax
import jax.numpy as jnp
from jax.experimental import pallas as pl
from jax.experimental.pallas import tpu as pltpu


def _round_up(x, m):
    return ((x + m - 1) // m) * m


_VMEM_LIMIT = 48 * 1024 * 1024          # scoped-VMEM budget (leaves headroom on v7x's 64 MiB)
_RESIDENT_H_BUDGET = 24 * 1024 * 1024   # gate for keeping H fully resident (x2 for dbl-buffer)


# ---------------------------------------------------------------------------
# Kernels
# ---------------------------------------------------------------------------
def _gconv_kernel(a_ref, h_ref, w_ref, b_ref, o_ref, acc_ref, *,
                  relu, tk, resident_h):
    """One graph-conv layer:  o = relu_opt((A @ H) @ W + b).

    grid = (row blocks i, adjacency column blocks k); k is the reduction axis.
    acc_ref is a (tm, F_in) f32 accumulator for the aggregation A @ H.
    H is either fully resident (sliced per k step) or streamed in (tk, F_in) tiles.
    """
    k = pl.program_id(1)

    @pl.when(k == 0)
    def _():
        acc_ref[...] = jnp.zeros_like(acc_ref)

    if resident_h:
        off = pl.multiple_of(k * tk, tk)
        h_blk = h_ref[pl.ds(off, tk), :]
    else:
        h_blk = h_ref[...]

    # bf16 x bf16 -> f32 accumulation on the MXU.
    acc_ref[...] += jnp.dot(a_ref[...], h_blk,
                            preferred_element_type=jnp.float32)

    @pl.when(k == pl.num_programs(1) - 1)
    def _():
        # Transform + epilogue (f32), bf16 MXU inputs.
        y = jnp.dot(acc_ref[...].astype(jnp.bfloat16), w_ref[...],
                    preferred_element_type=jnp.float32) + b_ref[...]
        if relu:
            y = jnp.maximum(y, 0.0)
        o_ref[...] = y.astype(o_ref.dtype)


def _pool_kernel(h_ref, batch_ref, invc_ref, o_ref):
    """Global mean pool: out[g, :] += (1/|V_g|) * sum_{i in tile, batch[i]==g} h3[i, :].

    The (G_pad, OUT_pad) output block is resident across the whole (row-tile) grid.
    Padded rows carry batch id == num_graphs, a padded slot that is sliced off.
    """
    i = pl.program_id(0)

    @pl.when(i == 0)
    def _():
        o_ref[...] = jnp.zeros_like(o_ref)

    g_pad, tm = o_ref.shape[0], h_ref.shape[0]
    ids = batch_ref[...]                                          # (1, tm) int32
    onehot = (jax.lax.broadcasted_iota(jnp.int32, (g_pad, tm), 0)
              == ids).astype(jnp.float32)                         # (G_pad, tm)
    pooled_w = onehot * invc_ref[...]                             # rows scaled 1/|V_g|
    o_ref[...] += jnp.dot(pooled_w, h_ref[...],
                          preferred_element_type=jnp.float32)


# ---------------------------------------------------------------------------
# pallas_call wrappers
# ---------------------------------------------------------------------------
def gconv_layer(a_bf, h_bf, w_bf, b_f32, *, relu, tm, tk,
                out_dtype=jnp.bfloat16):
    """relu_opt((A @ H) @ W + b), streaming A in (tm, tk) bf16 tiles."""
    n = a_bf.shape[0]
    f_in = h_bf.shape[1]
    f_out = w_bf.shape[1]
    assert n % tm == 0 and n % tk == 0, "caller must pad N to the tile multiple"
    grid = (n // tm, n // tk)

    # Keep H fully resident when it fits (avoids re-streaming H per row block).
    resident_h = (2 * n * f_in * 2) <= _RESIDENT_H_BUDGET
    if resident_h:
        h_spec = pl.BlockSpec((n, f_in), lambda i, k: (0, 0))     # resident
    else:
        h_spec = pl.BlockSpec((tk, f_in), lambda i, k: (k, 0))    # streamed fallback

    kernel = functools.partial(_gconv_kernel, relu=relu, tk=tk,
                               resident_h=resident_h)
    return pl.pallas_call(
        kernel,
        out_shape=jax.ShapeDtypeStruct((n, f_out), out_dtype),
        grid_spec=pltpu.PrefetchScalarGridSpec(
            num_scalar_prefetch=0,
            grid=grid,
            in_specs=[
                pl.BlockSpec((tm, tk), lambda i, k: (i, k)),       # A row/col tile
                h_spec,                                            # H (resident or tile)
                pl.BlockSpec((f_in, f_out), lambda i, k: (0, 0)),  # W (resident)
                pl.BlockSpec((1, f_out), lambda i, k: (0, 0)),     # b (resident)
            ],
            out_specs=pl.BlockSpec((tm, f_out), lambda i, k: (i, 0)),
            scratch_shapes=[pltpu.VMEM((tm, f_in), jnp.float32)],
        ),
        compiler_params=pltpu.CompilerParams(
            dimension_semantics=("parallel", "arbitrary"),
            vmem_limit_bytes=_VMEM_LIMIT,
        ),
    )(a_bf, h_bf, w_bf, b_f32)


def mean_pool(h3_f32, batch_2d, inv_counts, *, tm):
    """Tiny un-fused mean-pool kernel: (G_pad, OUT_pad) resident accumulator output."""
    n_pad, f_out = h3_f32.shape
    g_pad = inv_counts.shape[0]
    assert n_pad % tm == 0
    return pl.pallas_call(
        _pool_kernel,
        out_shape=jax.ShapeDtypeStruct((g_pad, f_out), jnp.float32),
        grid_spec=pltpu.PrefetchScalarGridSpec(
            num_scalar_prefetch=0,
            grid=(n_pad // tm,),
            in_specs=[
                pl.BlockSpec((tm, f_out), lambda i: (i, 0)),       # h3 row tile
                pl.BlockSpec((1, tm), lambda i: (0, i)),           # batch ids (row tile)
                pl.BlockSpec((g_pad, 1), lambda i: (0, 0)),        # 1/|V_g| (resident)
            ],
            out_specs=pl.BlockSpec((g_pad, f_out), lambda i: (0, 0)),
        ),
        compiler_params=pltpu.CompilerParams(
            dimension_semantics=("arbitrary",),
            vmem_limit_bytes=_VMEM_LIMIT,
        ),
    )(h3_f32, batch_2d, inv_counts)


def gnn5_forward(adj_hat, x, w1, b1, w2, b2, w3, b3, batch, num_graphs):
    """Full GNN5 forward: 3 graph convs (ReLU after 1 & 2) + global mean pool."""
    n = adj_hat.shape[0]
    in_dim, mid_dim, out_dim = x.shape[1], w1.shape[1], w3.shape[1]

    # Tile sizes (review: tm=512, tk>=256 to fill the 256-deep MXU and amortize
    # per-step overhead).  N is zero-padded to the tile multiple.
    n_pad = _round_up(max(n, 256), 256)
    tm = 512 if n_pad % 512 == 0 else 256
    tk = 256
    in_pad = _round_up(in_dim, 128)       # lane-dense layer 1
    mid_pad = _round_up(mid_dim, 128)
    out_pad = _round_up(out_dim, 128)     # lane-dense output

    a_bf = jnp.zeros((n_pad, n_pad), jnp.bfloat16)
    a_bf = a_bf.at[:n, :n].set(adj_hat.astype(jnp.bfloat16))
    x_bf = jnp.zeros((n_pad, in_pad), jnp.bfloat16)
    x_bf = x_bf.at[:n, :in_dim].set(x.astype(jnp.bfloat16))

    def pad_w(w, r, c):
        wp = jnp.zeros((r, c), jnp.bfloat16)
        return wp.at[:w.shape[0], :w.shape[1]].set(w.astype(jnp.bfloat16))

    def pad_b(b, c):
        bp = jnp.zeros((1, c), jnp.float32)
        return bp.at[:, :b.shape[-1]].set(b.reshape(1, -1).astype(jnp.float32))

    w1p, b1p = pad_w(w1, in_pad, mid_pad), pad_b(b1, mid_pad)
    w2p, b2p = pad_w(w2, mid_pad, mid_pad), pad_b(b2, mid_pad)
    w3p, b3p = pad_w(w3, mid_pad, out_pad), pad_b(b3, out_pad)

    # Layers 1 & 2 (ReLU), bf16 activations between layers; layer 3 in f32.
    h = gconv_layer(a_bf, x_bf, w1p, b1p, relu=True, tm=tm, tk=tk)
    h = gconv_layer(a_bf, h, w2p, b2p, relu=True, tm=tm, tk=tk)
    h3 = gconv_layer(a_bf, h, w3p, b3p, relu=False, tm=tm, tk=tk,
                     out_dtype=jnp.float32)

    # Global mean pool (separate mini-kernel so layer-3's row axis stays parallel).
    # Padded rows (h3 == bias) are routed to graph slot `num_graphs`, sliced off below.
    has_pad_rows = n_pad > n
    g_pad = _round_up(num_graphs + (1 if has_pad_rows else 0), 8)
    batch_i32 = batch.astype(jnp.int32)
    batch_2d = jnp.full((1, n_pad), num_graphs, jnp.int32)
    batch_2d = batch_2d.at[0, :n].set(batch_i32)
    counts = jnp.zeros((num_graphs,), jnp.float32).at[batch_i32].add(1.0)
    inv_counts = jnp.zeros((g_pad, 1), jnp.float32)
    inv_counts = inv_counts.at[:num_graphs, 0].set(1.0 / jnp.maximum(counts, 1.0))

    pooled = mean_pool(h3, batch_2d, inv_counts, tm=tm)
    return pooled[:num_graphs, :out_dim]


# ---------------------------------------------------------------------------
# Glue: dense normalized adjacency (message-passing approximation)
# ---------------------------------------------------------------------------
def build_normalized_adjacency(edge_index, num_nodes):
    """Dense D^-1/2 (A + I) D^-1/2; self loops set (not added) so no double count."""
    src, dst = edge_index[0], edge_index[1]
    a = jnp.zeros((num_nodes, num_nodes), jnp.float32)
    a = a.at[dst, src].set(1.0)
    diag = jnp.arange(num_nodes)
    a = a.at[diag, diag].set(1.0)
    deg = a.sum(axis=1)
    d_inv_sqrt = jnp.where(deg > 0, 1.0 / jnp.sqrt(deg), 0.0)
    return d_inv_sqrt[:, None] * a * d_inv_sqrt[None, :]


# ---------------------------------------------------------------------------
# Demo / correctness check
# ---------------------------------------------------------------------------
if __name__ == "__main__":
    # 8 graphs x 125 nodes = 1000 nodes: exercises N-padding (1000 -> 1024), a
    # (2 x 4) grid per layer with tm=512 / tk=256, and the padded-row pool routing.
    NODES_PER_GRAPH, NUM_GRAPHS = 125, 8
    N = NODES_PER_GRAPH * NUM_GRAPHS
    IN_DIM, MIDDLE_DIM, OUT_DIM = 16, 256, 64

    key = jax.random.PRNGKey(0)
    k_x, k_w1, k_b1, k_w2, k_b2, k_w3, k_b3 = jax.random.split(key, 7)

    x = jax.random.normal(k_x, (N, IN_DIM), jnp.float32)

    # Bidirectional ring inside each graph.
    edges = []
    for g in range(NUM_GRAPHS):
        base = g * NODES_PER_GRAPH
        for i in range(NODES_PER_GRAPH):
            a, b = base + i, base + (i + 1) % NODES_PER_GRAPH
            edges.append((a, b))
            edges.append((b, a))
    edge_index = jnp.asarray(np.array(edges, dtype=np.int32).T)        # [2, E]
    batch = jnp.asarray(
        np.repeat(np.arange(NUM_GRAPHS), NODES_PER_GRAPH).astype(np.int32))

    # Deterministic synthetic parameters (3 conv layers: in->mid, mid->mid, mid->out).
    w1 = jax.random.normal(k_w1, (IN_DIM, MIDDLE_DIM), jnp.float32) * 0.1
    b1 = jax.random.normal(k_b1, (1, MIDDLE_DIM), jnp.float32) * 0.01
    w2 = jax.random.normal(k_w2, (MIDDLE_DIM, MIDDLE_DIM), jnp.float32) * 0.1
    b2 = jax.random.normal(k_b2, (1, MIDDLE_DIM), jnp.float32) * 0.01
    w3 = jax.random.normal(k_w3, (MIDDLE_DIM, OUT_DIM), jnp.float32) * 0.1
    b3 = jax.random.normal(k_b3, (1, OUT_DIM), jnp.float32) * 0.01
    logit_scale = jnp.asarray(np.log(1.0 / 0.07), jnp.float32)  # unused in forward

    adj_hat = build_normalized_adjacency(edge_index, N)

    out = gnn5_forward(adj_hat, x, w1, b1, w2, b2, w3, b3, batch, NUM_GRAPHS)
    out = jax.block_until_ready(out)

    # Pure-JAX reference with the SAME bf16-input / f32-accumulate casting strategy.
    def ref_forward():
        a_bf = adj_hat.astype(jnp.bfloat16)

        def layer(h_bf, w, b, relu):
            agg = jnp.dot(a_bf, h_bf, preferred_element_type=jnp.float32)
            y = jnp.dot(agg.astype(jnp.bfloat16), w.astype(jnp.bfloat16),
                        preferred_element_type=jnp.float32) + b
            if relu:
                y = jnp.maximum(y, 0.0)
            return y.astype(jnp.bfloat16)

        h = layer(x.astype(jnp.bfloat16), w1, b1, True)
        h = layer(h, w2, b2, True)
        agg = jnp.dot(a_bf, h, preferred_element_type=jnp.float32)
        h3 = jnp.dot(agg.astype(jnp.bfloat16), w3.astype(jnp.bfloat16),
                     preferred_element_type=jnp.float32) + b3
        onehot = (batch[None, :] == jnp.arange(NUM_GRAPHS)[:, None]).astype(jnp.float32)
        pool = onehot / jnp.maximum(onehot.sum(axis=1, keepdims=True), 1.0)
        return pool @ h3

    ref = jax.block_until_ready(ref_forward())

    assert out.shape == (NUM_GRAPHS, OUT_DIM)
    np.testing.assert_allclose(np.asarray(out), np.asarray(ref),
                               rtol=2e-2, atol=2e-2)
    print("KERNEL_OK")
</pallas_src>

<mosaic_0001>
module attributes {stable_mosaic.version = 11 : i64} {
  func.func @_gconv_kernel(%arg0: i32, %arg1: i32, %arg2: memref<512x256xbf16, #tpu.memory_space<vmem>>, %arg3: memref<1024x128xbf16, #tpu.memory_space<vmem>>, %arg4: memref<128x256xbf16, #tpu.memory_space<vmem>>, %arg5: memref<1x256xf32, #tpu.memory_space<vmem>>, %arg6: memref<512x256xbf16, #tpu.memory_space<vmem>>, %arg7: memref<512x128xf32, #tpu.memory_space<vmem>>) attributes {dimension_semantics = [#tpu.dimension_semantics<parallel>, #tpu.dimension_semantics<arbitrary>], iteration_bounds = array<i64: 2, 4>, scalar_prefetch = 0 : i64, scratch_operands = 1 : i64, tpu.core_type = #tpu.core_type<tc>, window_params = [{transform_indices = @transform_0, window_bounds = array<i64: 512, 256>}, {pipeline_mode = #tpu.pipeline_mode<synchronous>, transform_indices = @transform_1, window_bounds = array<i64: 1024, 128>}, {pipeline_mode = #tpu.pipeline_mode<synchronous>, transform_indices = @transform_2, window_bounds = array<i64: 128, 256>}, {pipeline_mode = #tpu.pipeline_mode<synchronous>, transform_indices = @transform_3, window_bounds = array<i64: 1, 256>}, {transform_indices = @transform_4, window_bounds = array<i64: 512, 256>}]} {
    %c0_i32 = arith.constant 0 : i32
    %0 = arith.cmpi eq, %arg1, %c0_i32 : i32
    %1 = arith.extui %0 : i1 to i32
    %c0_i32_0 = arith.constant 0 : i32
    %2 = arith.cmpi ne, %1, %c0_i32_0 : i32
    scf.if %2 {
      %cst_8 = arith.constant 0.000000e+00 : f32
      %15 = vector.broadcast %cst_8 : f32 to vector<512x128xf32>
      %c0_9 = arith.constant 0 : index
      %c0_10 = arith.constant 0 : index
      %16 = vector.load %arg7[%c0_9, %c0_10] : memref<512x128xf32, #tpu.memory_space<vmem>>, vector<512x128xf32>
      tpu.vector_store %arg7[%c0_9, %c0_10], %15 {strides = array<i32>} : memref<512x128xf32, #tpu.memory_space<vmem>>, vector<512x128xf32>,
    } else {
    }
    %c256_i32 = arith.constant 256 : i32
    %3 = arith.muli %arg1, %c256_i32 : i32
    %4 = tpu.assume_multiple %3, 256 : i32
    %5 = arith.index_cast %4 : i32 to index
    %c0 = arith.constant 0 : index
    %6 = vector.load %arg3[%5, %c0] : memref<1024x128xbf16, #tpu.memory_space<vmem>>, vector<256x128xbf16>
    %c0_1 = arith.constant 0 : index
    %c0_2 = arith.constant 0 : index
    %7 = vector.load %arg7[%c0_1, %c0_2] : memref<512x128xf32, #tpu.memory_space<vmem>>, vector<512x128xf32>
    %c0_3 = arith.constant 0 : index
    %c0_4 = arith.constant 0 : index
    %8 = vector.load %arg2[%c0_3, %c0_4] : memref<512x256xbf16, #tpu.memory_space<vmem>>, vector<512x256xbf16>
    %cst = arith.constant dense<0.000000e+00> : vector<512x128xf32>
    %9 = tpu.matmul %8, %6, %cst {dimension_numbers = #tpu.dot_dimension_numbers<[1], [0], [0], [1], [0, 0, 1, 1], [], []>} : vector<512x256xbf16>, vector<256x128xbf16>, vector<512x128xf32> -> vector<512x128xf32>
    %10 = arith.addf %7, %9 : vector<512x128xf32>
    %c0_5 = arith.constant 0 : index
    %c0_6 = arith.constant 0 : index
    %11 = vector.load %arg7[%c0_5, %c0_6] : memref<512x128xf32, #tpu.memory_space<vmem>>, vector<512x128xf32>
    tpu.vector_store %arg7[%c0_5, %c0_6], %10 {strides = array<i32>} : memref<512x128xf32, #tpu.memory_space<vmem>>, vector<512x128xf32>,
    %c3_i32 = arith.constant 3 : i32
    %12 = arith.cmpi eq, %arg1, %c3_i32 : i32
    %13 = arith.extui %12 : i1 to i32
    %c0_i32_7 = arith.constant 0 : i32
    %14 = arith.cmpi ne, %13, %c0_i32_7 : i32
    scf.if %14 {
      %c0_8 = arith.constant 0 : index
      %c0_9 = arith.constant 0 : index
      %15 = vector.load %arg7[%c0_8, %c0_9] : memref<512x128xf32, #tpu.memory_space<vmem>>, vector<512x128xf32>
      %16 = arith.truncf %15 : vector<512x128xf32> to vector<512x128xbf16>
      %c0_10 = arith.constant 0 : index
      %c0_11 = arith.constant 0 : index
      %17 = vector.load %arg4[%c0_10, %c0_11] : memref<128x256xbf16, #tpu.memory_space<vmem>>, vector<128x256xbf16>
      %cst_12 = arith.constant dense<0.000000e+00> : vector<512x256xf32>
      %18 = tpu.matmul %16, %17, %cst_12 {dimension_numbers = #tpu.dot_dimension_numbers<[1], [0], [0], [1], [0, 0, 1, 1], [], []>} : vector<512x128xbf16>, vector<128x256xbf16>, vector<512x256xf32> -> vector<512x256xf32>
      %c0_13 = arith.constant 0 : index
      %c0_14 = arith.constant 0 : index
      %19 = vector.load %arg5[%c0_13, %c0_14] : memref<1x256xf32, #tpu.memory_space<vmem>>, vector<1x256xf32>
      %20 = vector.broadcast %19 : vector<1x256xf32> to vector<512x256xf32>
      %21 = arith.addf %18, %20 : vector<512x256xf32>
      %cst_15 = arith.constant 0.000000e+00 : f32
      %22 = vector.broadcast %cst_15 : f32 to vector<512x256xf32>
      %23 = arith.maximumf %21, %22 : vector<512x256xf32>
      %24 = arith.truncf %23 : vector<512x256xf32> to vector<512x256xbf16>
      %c0_16 = arith.constant 0 : index
      %c0_17 = arith.constant 0 : index
      %25 = vector.load %arg6[%c0_16, %c0_17] : memref<512x256xbf16, #tpu.memory_space<vmem>>, vector<512x256xbf16>
      tpu.vector_store %arg6[%c0_16, %c0_17], %24 {strides = array<i32>} : memref<512x256xbf16, #tpu.memory_space<vmem>>, vector<512x256xbf16>,
    } else {
    }
    return
  }
  func.func @transform_0(%arg0: i32, %arg1: i32) -> (i32, i32) {
    %c0_i32 = arith.constant 0 : i32
    return %arg0, %arg1 : i32, i32
  }
  func.func @transform_1(%arg0: i32, %arg1: i32) -> (i32, i32) {
    %c0_i32 = arith.constant 0 : i32
    %c0_i32_0 = arith.constant 0 : i32
    %c0_i32_1 = arith.constant 0 : i32
    return %c0_i32, %c0_i32_0 : i32, i32
  }
  func.func @transform_2(%arg0: i32, %arg1: i32) -> (i32, i32) {
    %c0_i32 = arith.constant 0 : i32
    %c0_i32_0 = arith.constant 0 : i32
    %c0_i32_1 = arith.constant 0 : i32
    return %c0_i32, %c0_i32_0 : i32, i32
  }
  func.func @transform_3(%arg0: i32, %arg1: i32) -> (i32, i32) {
    %c0_i32 = arith.constant 0 : i32
    %c0_i32_0 = arith.constant 0 : i32
    %c0_i32_1 = arith.constant 0 : i32
    return %c0_i32, %c0_i32_0 : i32, i32
  }
  func.func @transform_4(%arg0: i32, %arg1: i32) -> (i32, i32) {
    %c0_i32 = arith.constant 0 : i32
    %c0_i32_0 = arith.constant 0 : i32
    return %arg0, %c0_i32 : i32, i32
  }
}

</mosaic_0001>

<llo_original>
// kernel: tpu_custom_call.1
$region0: #{tpu_custom_call.1}
  #allocation0 [shape = 'u32[]', space=smem, size = 0x4, offset = 0x4, fixed_abs, tag = 'smem constant byte address 0x4 - core index']
  #allocation1 [shape = 'u32[72,128]{1,0:T(1,128)}', space=vmem, size = 0x9000, scoped, tag = 'internal scratch']
  #allocation2 [shape = 'f32[512,128]{1,0:T(8,128)}', space=vmem, size = 0x40000, scoped, tag = 'scratch operand']
  %s0 = inlined_call_operand.hbm [shape: bf16[1024,1024], index: 0, kind: input, shape index: {}]
  %s1 = inlined_call_operand.hbm [shape: bf16[1024,128], index: 1, kind: input, shape index: {}]
  %s2 = inlined_call_operand.hbm [shape: bf16[128,256], index: 2, kind: input, shape index: {}]
  %s3 = inlined_call_operand.hbm [shape: f32[1,256], index: 3, kind: input, shape index: {}]
  %s4 = inlined_call_operand.hbm [shape: bf16[1024,256], index: 4, kind: output, shape index: {}]
  %s5 = sld [smem:[#allocation0]]
  $region73: #{tpu_custom_call.1} parent=0
    _
  %s7 = ssub.s32 1, %s5
  %s8 = scalar_select 0, %s7, %s5
  $region1: #{tpu_custom_call.1} parent=0
    #allocation3 [shape = 'u8[524288]{0}', space=vmem, size = 0x80000, scoped, tag = 'input window, operand 0']
    #allocation4 [shape = 's32[2]{0}', space=sflag, size = 0x8, scoped, tag = 'scoped memory for tpu_custom_call.1']
    #allocation5 [shape = 's32[2]{0}', space=sflag, size = 0x8, scoped, tag = 'scoped memory for tpu_custom_call.1']
    #allocation6 [shape = 'u8[262144]{0}', space=vmem, size = 0x40000, scoped, tag = 'input window, operand 1, single buffered']
    #allocation7 [shape = 's32[1]{0}', space=sflag, size = 0x4, scoped, tag = 'scoped memory for tpu_custom_call.1']
    #allocation8 [shape = 'u8[65536]{0}', space=vmem, size = 0x10000, scoped, tag = 'input window, operand 2, single buffered']
    #allocation9 [shape = 'u8[1024]{0}', space=vmem, size = 0x400, scoped, tag = 'input window, operand 3, single buffered']
    #allocation10 [shape = 's32[1]{0}', space=sflag, size = 0x4, scoped, tag = 'scoped memory for tpu_custom_call.1']
    #allocation11 [shape = 'u8[524288]{0}', space=vmem, size = 0x80000, scoped, tag = 'output window, operand 0']
    %9 = vsyncpa [#allocation4], 0
    %s10 = scalar_lea.sflag [#allocation4], 1
    %11 = vsyncpa %s10, 0
    %12 = vsyncpa [#allocation7], 0
    %13 = vsyncpa [#allocation10], 0
    %14 = vsyncpa [#allocation5], 0
    %s15 = scalar_lea.sflag [#allocation5], 1
    %16 = vsyncpa %s15, 0
    loop: start=0, step=1, limit=10
    $region2: #{tpu_custom_call.1} parent=1 // loop_pre_header
      _
    $region3: #{tpu_custom_call.1} parent=1 // loop_header
      %s18 = sphi 0, %s22
      %p19 = scmp.ge.s32.totalorder %s18, 10
      %s25 = sphi 0, %s37
      %s26 = sphi 0, %s33
      %s27 = sphi 0, %s25
      %s28 = sphi 0, %s26
      %s29 = sphi 0, %s27
      %s30 = sphi 0, %s28
      %s42 = sphi 0, %s44
      %s45 = sphi 0, %s42
      %s46 = sphi 0, %s45
      %s62 = sphi 0, %s46
      %s66 = sphi 0, %s66
      %s68 = sphi 0, %s66
      %s69 = sphi 0, %s68
      %s83 = sphi 0, %s69
      %s87 = sphi 0, %s87
      %s89 = sphi 0, %s87
      %s90 = sphi 0, %s89
      %s104 = sphi 0, %s90
      %s108 = sphi 0, %s108
      %s110 = sphi 0, %s108
      %s111 = sphi 0, %s110
      %s125 = sphi 0, %s111
      %s131 = sphi 0, %s133
      %s134 = sphi 0, %s131
      %s135 = sphi 0, %s134
      %s151 = sphi 0, %s135
    $region4: #{tpu_custom_call.1} parent=1 // loop_header_branch
      %21 = sbr.rel (%p19) target = $region8
    $region5: #{tpu_custom_call.1} parent=1 // loop_body
      %s23 = ssub.s32 %s18, 1
      %s24 = ssub.s32 %s18, 2
      %s31 = sadd.s32 1, %s26
      %p32 = scmp.ge.s32.totalorder %s31, 4
      %s33 = scalar_select %p32, 0, %s31
      %s34 = sadd.s32 1, %s25
      %s35 = scalar_select %p32, %s34, %s25
      %p36 = scmp.ge.s32.totalorder %s35, 2
      %s37 = scalar_select %p36, 0, %s35
      %s38 = ssub.s32 %s25, %s37
      %s39 = ssub.s32 %s26, %s33
      %s40 = sor.u32 %s38, %s39
      %p41 = scmp.eq.s32.totalorder %s40, 0
      %s43 = sadd.s32 %s42, 1
      %s44 = scalar_select %p41, %s42, %s43
      %p47 = pneg %p41
      %p48 = scmp.eq.s32.totalorder %s18, 7
      %p49 = por %p47, %p48
      %p50 = scmp.ne.s32.totalorder %s42, %s45
      %p51 = scmp.eq.s32.totalorder %s18, 0
      %p52 = por %p50, %p51
      %p53 = scmp.ne.s32.totalorder %s42, %s45
      %p54 = scmp.eq.s32.totalorder %s23, 7
      %p55 = por %p53, %p54
      %p56 = scmp.ne.s32.totalorder %s45, %s46
      %p57 = scmp.eq.s32.totalorder %s23, 0
      %p58 = por %p56, %p57
      %p59 = scmp.ne.s32.totalorder %s45, %s46
      %p60 = scmp.eq.s32.totalorder %s24, 7
      %p61 = por %p59, %p60
      %p63 = scmp.ne.s32.totalorder %s46, %s62
      %p64 = scmp.eq.s32.totalorder %s24, 0
      %p65 = por %p63, %p64
      %s67 = sadd.s32 %s66, 1
      %p70 = scmp.eq.s32.totalorder %s18, 7
      %p71 = scmp.ne.s32.totalorder %s66, %s68
      %p72 = scmp.eq.s32.totalorder %s18, 0
      %p73 = por %p71, %p72
      %p74 = scmp.ne.s32.totalorder %s66, %s68
      %p75 = scmp.eq.s32.totalorder %s23, 7
      %p76 = por %p74, %p75
      %p77 = scmp.ne.s32.totalorder %s68, %s69
      %p78 = scmp.eq.s32.totalorder %s23, 0
      %p79 = por %p77, %p78
      %p80 = scmp.ne.s32.totalorder %s68, %s69
      %p81 = scmp.eq.s32.totalorder %s24, 7
      %p82 = por %p80, %p81
      %p84 = scmp.ne.s32.totalorder %s69, %s83
      %p85 = scmp.eq.s32.totalorder %s24, 0
      %p86 = por %p84, %p85
      %s88 = sadd.s32 %s87, 1
      %p91 = scmp.eq.s32.totalorder %s18, 7
      %p92 = scmp.ne.s32.totalorder %s87, %s89
      %p93 = scmp.eq.s32.totalorder %s18, 0
      %p94 = por %p92, %p93
      %p95 = scmp.ne.s32.totalorder %s87, %s89
      %p96 = scmp.eq.s32.totalorder %s23, 7
      %p97 = por %p95, %p96
      %p98 = scmp.ne.s32.totalorder %s89, %s90
      %p99 = scmp.eq.s32.totalorder %s23, 0
      %p100 = por %p98, %p99
      %p101 = scmp.ne.s32.totalorder %s89, %s90
      %p102 = scmp.eq.s32.totalorder %s24, 7
      %p103 = por %p101, %p102
      %p105 = scmp.ne.s32.totalorder %s90, %s104
      %p106 = scmp.eq.s32.totalorder %s24, 0
      %p107 = por %p105, %p106
      %s109 = sadd.s32 %s108, 1
      %p112 = scmp.eq.s32.totalorder %s18, 7
      %p113 = scmp.ne.s32.totalorder %s108, %s110
      %p114 = scmp.eq.s32.totalorder %s18, 0
      %p115 = por %p113, %p114
      %p116 = scmp.ne.s32.totalorder %s108, %s110
      %p117 = scmp.eq.s32.totalorder %s23, 7
      %p118 = por %p116, %p117
      %p119 = scmp.ne.s32.totalorder %s110, %s111
      %p120 = scmp.eq.s32.totalorder %s23, 0
      %p121 = por %p119, %p120
      %p122 = scmp.ne.s32.totalorder %s110, %s111
      %p123 = scmp.eq.s32.totalorder %s24, 7
      %p124 = por %p122, %p123
      %p126 = scmp.ne.s32.totalorder %s111, %s125
      %p127 = scmp.eq.s32.totalorder %s24, 0
      %p128 = por %p126, %p127
      %s129 = ssub.s32 %s25, %s37
      %p130 = scmp.eq.s32.totalorder %s129, 0
      %s132 = sadd.s32 %s131, 1
      %s133 = scalar_select %p130, %s131, %s132
      %p136 = pneg %p130
      %p137 = scmp.eq.s32.totalorder %s18, 7
      %p138 = por %p136, %p137
      %p139 = scmp.ne.s32.totalorder %s131, %s134
      %p140 = scmp.eq.s32.totalorder %s18, 0
      %p141 = por %p139, %p140
      %p142 = scmp.ne.s32.totalorder %s131, %s134
      %p143 = scmp.eq.s32.totalorder %s23, 7
      %p144 = por %p142, %p143
      %p145 = scmp.ne.s32.totalorder %s134, %s135
      %p146 = scmp.eq.s32.totalorder %s23, 0
      %p147 = por %p145, %p146
      %p148 = scmp.ne.s32.totalorder %s134, %s135
      %p149 = scmp.eq.s32.totalorder %s24, 7
      %p150 = por %p148, %p149
      %p152 = scmp.ne.s32.totalorder %s135, %s151
      %p153 = scmp.eq.s32.totalorder %s24, 0
      %p154 = por %p152, %p153
      %p155 = scmp.le.s32.totalorder 1, %s18
      %p156 = scmp.lt.s32.totalorder %s18, 9
      %p157 = pnand %p155, %p156
      %p158 = pneg %p157
      // Predicated region
      $region9: #{tpu_custom_call.1} parent=5 // pred_check
        _
      $region10: #{tpu_custom_call.1} parent=5 // pred_check_branch
        %160 = sbr.rel (%p157) target = $region12
      $region11: #{tpu_custom_call.1} parent=5 // pred_region
        %s161 = ssub.s32 %s18, 1
        // Predicated region
        $region13: #{tpu_custom_call.1} parent=11 // pred_check
          %p162 = pneg %p79
        $region14: #{tpu_custom_call.1} parent=11 // pred_check_branch
          %164 = sbr.rel (%p162) target = $region16
        $region15: #{tpu_custom_call.1} parent=11 // pred_region
          %166 = vsyncadd [#allocation7], 0
          %s167 = sshll.u32 %s1, 4
          %s168 = int_to_ptr.hbm [resolvable:$true] %s167
          %s169 = sshll.u32 [#allocation6], 4
          %s170 = int_to_ptr.vmem [resolvable:$true] %s169
          %175 = dma.hbm_to_vmem [thread:$0]  %s168, 8192, %s170, [#allocation7], 64, 64, 4
        $region16: #{tpu_custom_call.1} parent=11 // pred_fallthru
          _
        // Predicated region
        $region17: #{tpu_custom_call.1} parent=11 // pred_check
          %p176 = pneg %p100
        $region18: #{tpu_custom_call.1} parent=11 // pred_check_branch
          %178 = sbr.rel (%p176) target = $region20
        $region19: #{tpu_custom_call.1} parent=11 // pred_region
          %180 = vsyncadd [#allocation7], 0
          %s181 = sshll.u32 %s2, 4
          %s182 = int_to_ptr.hbm [resolvable:$true] %s181
          %s183 = sshll.u32 [#allocation8], 4
          %s184 = int_to_ptr.vmem [resolvable:$true] %s183
          %189 = dma.hbm_to_vmem [thread:$0]  %s182, 2048, %s184, [#allocation7], 128, 128, 8
        $region20: #{tpu_custom_call.1} parent=11 // pred_fallthru
          _
        // Predicated region
        $region21: #{tpu_custom_call.1} parent=11 // pred_check
          %p190 = pneg %p121
        $region22: #{tpu_custom_call.1} parent=11 // pred_check_branch
          %192 = sbr.rel (%p190) target = $region24
        $region23: #{tpu_custom_call.1} parent=11 // pred_region
          %194 = vsyncadd [#allocation10], 0
          %s196 = sshll.u32 %s3, 4
          %s197 = int_to_ptr.hbm [resolvable:$true] %s196
          %s198 = sshll.u32 [#allocation9], 4
          %s199 = int_to_ptr.vmem [resolvable:$true] %s198
          %201 = dma.hbm_to_vmem [thread:$0]  %s197, 32, %s199, [#allocation10]
        $region24: #{tpu_custom_call.1} parent=11 // pred_fallthru
          _
      $region12: #{tpu_custom_call.1} parent=5 // pred_fallthru
        _
      %p202 = scmp.lt.s32.totalorder %s18, 8
      // Predicated region
      $region25: #{tpu_custom_call.1} parent=5 // pred_check
        %p203 = pneg %p202
      $region26: #{tpu_custom_call.1} parent=5 // pred_check_branch
        %205 = sbr.rel (%p203) target = $region28
      $region27: #{tpu_custom_call.1} parent=5 // pred_region
        // Predicated region
        $region29: #{tpu_custom_call.1} parent=27 // pred_check
          %p206 = pneg %p52
        $region30: #{tpu_custom_call.1} parent=27 // pred_check_branch
          %208 = sbr.rel (%p206) target = $region32
        $region31: #{tpu_custom_call.1} parent=27 // pred_region
          %s209 = sand.u32 %s42, 1
          %s210 = scalar_lea.sflag [#allocation4], %s209
          %s211 = sand.u32 %s42, 1
          %s212 = smul.addr %s211, 512
          %s213 = scalar_lea.vmem [#allocation3], %s212
          %s214 = smul.u32 64, %s25
          %s215 = smul.u32 2, %s26
          %217 = vsyncadd %s210, 0
          %s218 = smul.addr %s214, 8
          %s219 = sadd.s32 %s215, %s218
          %s220 = smul.addr %s219, 4
          %s221 = scalar_lea.hbm %s0, %s220
          %s222 = sshll.u32 %s221, 4
          %s223 = int_to_ptr.hbm [resolvable:$true] %s222
          %s224 = sshll.u32 %s213, 4
          %s225 = int_to_ptr.vmem [resolvable:$true] %s224
          %230 = dma.hbm_to_vmem [thread:$0]  %s223, 8192, %s225, %s210, 512, 128, 8
        $region32: #{tpu_custom_call.1} parent=27 // pred_fallthru
          _
      $region28: #{tpu_custom_call.1} parent=5 // pred_fallthru
        _
      %p231 = scmp.le.s32.totalorder 1, %s18
      %p232 = scmp.lt.s32.totalorder %s18, 9
      %p233 = pnand %p231, %p232
      %p234 = pneg %p233
      // Predicated region
      $region33: #{tpu_custom_call.1} parent=5 // pred_check
        _
      $region34: #{tpu_custom_call.1} parent=5 // pred_check_branch
        %236 = sbr.rel (%p233) target = $region36
      $region35: #{tpu_custom_call.1} parent=5 // pred_region
        %s237 = ssub.s32 %s18, 1
        %s238 = sand.u32 %s45, 1
        %s239 = scalar_lea.sflag [#allocation4], %s238
        %s240 = sand.u32 %s45, 1
        %s241 = smul.addr %s240, 512
        %s242 = scalar_lea.vmem [#allocation3], %s241
        // Predicated region
        $region37: #{tpu_custom_call.1} parent=35 // pred_check
          %p243 = pneg %p58
        $region38: #{tpu_custom_call.1} parent=35 // pred_check_branch
          %245 = sbr.rel (%p243) target = $region40
        $region39: #{tpu_custom_call.1} parent=35 // pred_region
          %247 = dma.done %s239, 8192
        $region40: #{tpu_custom_call.1} parent=35 // pred_fallthru
          _
        // Predicated region
        $region41: #{tpu_custom_call.1} parent=35 // pred_check
          %p248 = pneg %p79
        $region42: #{tpu_custom_call.1} parent=35 // pred_check_branch
          %250 = sbr.rel (%p248) target = $region44
        $region43: #{tpu_custom_call.1} parent=35 // pred_region
          %252 = dma.done [#allocation7], 8192
        $region44: #{tpu_custom_call.1} parent=35 // pred_fallthru
          _
        // Predicated region
        $region45: #{tpu_custom_call.1} parent=35 // pred_check
          %p253 = pneg %p100
        $region46: #{tpu_custom_call.1} parent=35 // pred_check_branch
          %255 = sbr.rel (%p253) target = $region48
        $region47: #{tpu_custom_call.1} parent=35 // pred_region
          %257 = dma.done [#allocation7], 2048
        $region48: #{tpu_custom_call.1} parent=35 // pred_fallthru
          _
        // Predicated region
        $region49: #{tpu_custom_call.1} parent=35 // pred_check
          %p258 = pneg %p121
        $region50: #{tpu_custom_call.1} parent=35 // pred_check_branch
          %260 = sbr.rel (%p258) target = $region52
        $region51: #{tpu_custom_call.1} parent=35 // pred_region
          %262 = dma.done [#allocation10], 32
        $region52: #{tpu_custom_call.1} parent=35 // pred_fallthru
          _
        %s263 = sand.u32 %s45, 1
        %s264 = scalar_lea.sflag [#allocation4], %s263
        %s265 = sand.u32 %s45, 1
        %s266 = smul.addr %s265, 512
        %s267 = scalar_lea.vmem [#allocation3], %s266
        %p268 = pneg %p58
        %p269 = pneg %p55
        %p270 = pneg %p79
        %p271 = pneg %p76
        %p272 = pneg %p100
        %p273 = pneg %p97
        %p274 = pneg %p121
        %p275 = pneg %p118
        %p276 = pneg %p147
        %p277 = pneg %p144
        %s278 = sand.u32 %s134, 1
        %s279 = scalar_lea.sflag [#allocation5], %s278
        %s280 = sand.u32 %s134, 1
        %s281 = smul.addr %s280, 512
        %s282 = scalar_lea.vmem [#allocation11], %s281
        %s283 = smul.u32 64, %s27
        %s284 = smul.u32 2, %s28
        %s285 = smul.u32 64, %s27
        %p286 = scmp.eq.s32.totalorder %s28, 0
        // Predicated region
        $region53: #{tpu_custom_call.1} parent=35 // pred_check
          %p287 = pneg %p286
        $region54: #{tpu_custom_call.1} parent=35 // pred_check_branch
          %289 = sbr.rel (%p287) target = $region56
        $region55: #{tpu_custom_call.1} parent=35 // pred_region
          %290 = vst [vmem:[#allocation2] sm:$0xff] 0.0
          %291 = vst [vmem:[#allocation2 + $0x8] sm:$0xff] 0.0
          %292 = vst [vmem:[#allocation2 + $0x10] sm:$0xff] 0.0
          %293 = vst [vmem:[#allocation2 + $0x18] sm:$0xff] 0.0
          %294 = vst [vmem:[#allocation2 + $0x20] sm:$0xff] 0.0
          %295 = vst [vmem:[#allocation2 + $0x28] sm:$0xff] 0.0
          %296 = vst [vmem:[#allocation2 + $0x30] sm:$0xff] 0.0
          %297 = vst [vmem:[#allocation2 + $0x38] sm:$0xff] 0.0
          %298 = vst [vmem:[#allocation2 + $0x40] sm:$0xff] 0.0
          %299 = vst [vmem:[#allocation2 + $0x48] sm:$0xff] 0.0
          %300 = vst [vmem:[#allocation2 + $0x50] sm:$0xff] 0.0
          %301 = vst [vmem:[#allocation2 + $0x58] sm:$0xff] 0.0
          %302 = vst [vmem:[#allocation2 + $0x60] sm:$0xff] 0.0
          %303 = vst [vmem:[#allocation2 + $0x68] sm:$0xff] 0.0
          %304 = vst [vmem:[#allocation2 + $0x70] sm:$0xff] 0.0
          %305 = vst [vmem:[#allocation2 + $0x78] sm:$0xff] 0.0
          %306 = vst [vmem:[#allocation2 + $0x80] sm:$0xff] 0.0
          %307 = vst [vmem:[#allocation2 + $0x88] sm:$0xff] 0.0
          %308 = vst [vmem:[#allocation2 + $0x90] sm:$0xff] 0.0
          %309 = vst [vmem:[#allocation2 + $0x98] sm:$0xff] 0.0
          %310 = vst [vmem:[#allocation2 + $0xa0] sm:$0xff] 0.0
          %311 = vst [vmem:[#allocation2 + $0xa8] sm:$0xff] 0.0
          %312 = vst [vmem:[#allocation2 + $0xb0] sm:$0xff] 0.0
          %313 = vst [vmem:[#allocation2 + $0xb8] sm:$0xff] 0.0
          %314 = vst [vmem:[#allocation2 + $0xc0] sm:$0xff] 0.0
          %315 = vst [vmem:[#allocation2 + $0xc8] sm:$0xff] 0.0
          %316 = vst [vmem:[#allocation2 + $0xd0] sm:$0xff] 0.0
          %317 = vst [vmem:[#allocation2 + $0xd8] sm:$0xff] 0.0
          %318 = vst [vmem:[#allocation2 + $0xe0] sm:$0xff] 0.0
          %319 = vst [vmem:[#allocation2 + $0xe8] sm:$0xff] 0.0
          %320 = vst [vmem:[#allocation2 + $0xf0] sm:$0xff] 0.0
          %321 = vst [vmem:[#allocation2 + $0xf8] sm:$0xff] 0.0
          %322 = vst [vmem:[#allocation2 + $0x100] sm:$0xff] 0.0
          %323 = vst [vmem:[#allocation2 + $0x108] sm:$0xff] 0.0
          %324 = vst [vmem:[#allocation2 + $0x110] sm:$0xff] 0.0
          %325 = vst [vmem:[#allocation2 + $0x118] sm:$0xff] 0.0
          %326 = vst [vmem:[#allocation2 + $0x120] sm:$0xff] 0.0
          %327 = vst [vmem:[#allocation2 + $0x128] sm:$0xff] 0.0
          %328 = vst [vmem:[#allocation2 + $0x130] sm:$0xff] 0.0
          %329 = vst [vmem:[#allocation2 + $0x138] sm:$0xff] 0.0
          %330 = vst [vmem:[#allocation2 + $0x140] sm:$0xff] 0.0
          %331 = vst [vmem:[#allocation2 + $0x148] sm:$0xff] 0.0
          %332 = vst [vmem:[#allocation2 + $0x150] sm:$0xff] 0.0
          %333 = vst [vmem:[#allocation2 + $0x158] sm:$0xff] 0.0
          %334 = vst [vmem:[#allocation2 + $0x160] sm:$0xff] 0.0
          %335 = vst [vmem:[#allocation2 + $0x168] sm:$0xff] 0.0
          %336 = vst [vmem:[#allocation2 + $0x170] sm:$0xff] 0.0
          %337 = vst [vmem:[#allocation2 + $0x178] sm:$0xff] 0.0
          %338 = vst [vmem:[#allocation2 + $0x180] sm:$0xff] 0.0
          %339 = vst [vmem:[#allocation2 + $0x188] sm:$0xff] 0.0
          %340 = vst [vmem:[#allocation2 + $0x190] sm:$0xff] 0.0
          %341 = vst [vmem:[#allocation2 + $0x198] sm:$0xff] 0.0
          %342 = vst [vmem:[#allocation2 + $0x1a0] sm:$0xff] 0.0
          %343 = vst [vmem:[#allocation2 + $0x1a8] sm:$0xff] 0.0
          %344 = vst [vmem:[#allocation2 + $0x1b0] sm:$0xff] 0.0
          %345 = vst [vmem:[#allocation2 + $0x1b8] sm:$0xff] 0.0
          %346 = vst [vmem:[#allocation2 + $0x1c0] sm:$0xff] 0.0
          %347 = vst [vmem:[#allocation2 + $0x1c8] sm:$0xff] 0.0
          %348 = vst [vmem:[#allocation2 + $0x1d0] sm:$0xff] 0.0
          %349 = vst [vmem:[#allocation2 + $0x1d8] sm:$0xff] 0.0
          %350 = vst [vmem:[#allocation2 + $0x1e0] sm:$0xff] 0.0
          %351 = vst [vmem:[#allocation2 + $0x1e8] sm:$0xff] 0.0
          %352 = vst [vmem:[#allocation2 + $0x1f0] sm:$0xff] 0.0
          %353 = vst [vmem:[#allocation2 + $0x1f8] sm:$0xff] 0.0
        $region56: #{tpu_custom_call.1} parent=35 // pred_fallthru
          _
        %s354 = smul.u32 %s28, 256
        %s355 = sshra.s32 %s354, 3
        %s356 = sand.u32 %s354, 7
        %s357 = smul.addr %s355, 4
        %s358 = scalar_lea.vmem [#allocation6], %s357
        %v359 = vld [vmem:[%s358] sm:$0xf]
        %v360 = vld [vmem:[%s358 + $0x4] sm:$0xf]
        %v361 = vld [vmem:[%s358 + $0x8] sm:$0xf]
        %v362 = vld [vmem:[%s358 + $0xc] sm:$0xf]
        %v363 = vld [vmem:[%s358 + $0x10] sm:$0xf]
        %v364 = vld [vmem:[%s358 + $0x14] sm:$0xf]
        %v365 = vld [vmem:[%s358 + $0x18] sm:$0xf]
        %v366 = vld [vmem:[%s358 + $0x1c] sm:$0xf]
        %v367 = vld [vmem:[%s358 + $0x20] sm:$0xf]
        %v368 = vld [vmem:[%s358 + $0x24] sm:$0xf]
        %v369 = vld [vmem:[%s358 + $0x28] sm:$0xf]
        %v370 = vld [vmem:[%s358 + $0x2c] sm:$0xf]
        %v371 = vld [vmem:[%s358 + $0x30] sm:$0xf]
        %v372 = vld [vmem:[%s358 + $0x34] sm:$0xf]
        %v373 = vld [vmem:[%s358 + $0x38] sm:$0xf]
        %v374 = vld [vmem:[%s358 + $0x3c] sm:$0xf]
        %v375 = vld [vmem:[%s358 + $0x40] sm:$0xf]
        %v376 = vld [vmem:[%s358 + $0x44] sm:$0xf]
        %v377 = vld [vmem:[%s358 + $0x48] sm:$0xf]
        %v378 = vld [vmem:[%s358 + $0x4c] sm:$0xf]
        %v379 = vld [vmem:[%s358 + $0x50] sm:$0xf]
        %v380 = vld [vmem:[%s358 + $0x54] sm:$0xf]
        %v381 = vld [vmem:[%s358 + $0x58] sm:$0xf]
        %v382 = vld [vmem:[%s358 + $0x5c] sm:$0xf]
        %v383 = vld [vmem:[%s358 + $0x60] sm:$0xf]
        %v384 = vld [vmem:[%s358 + $0x64] sm:$0xf]
        %v385 = vld [vmem:[%s358 + $0x68] sm:$0xf]
        %v386 = vld [vmem:[%s358 + $0x6c] sm:$0xf]
        %v387 = vld [vmem:[%s358 + $0x70] sm:$0xf]
        %v388 = vld [vmem:[%s358 + $0x74] sm:$0xf]
        %v389 = vld [vmem:[%s358 + $0x78] sm:$0xf]
        %v390 = vld [vmem:[%s358 + $0x7c] sm:$0xf]
        %v391 = vld [vmem:[#allocation2] sm:$0xff]
        %v392 = vld [vmem:[#allocation2 + $0x8] sm:$0xff]
        %v393 = vld [vmem:[#allocation2 + $0x10] sm:$0xff]
        %v394 = vld [vmem:[#allocation2 + $0x18] sm:$0xff]
        %v395 = vld [vmem:[#allocation2 + $0x20] sm:$0xff]
        %v396 = vld [vmem:[#allocation2 + $0x28] sm:$0xff]
        %v397 = vld [vmem:[#allocation2 + $0x30] sm:$0xff]
        %v398 = vld [vmem:[#allocation2 + $0x38] sm:$0xff]
        %v399 = vld [vmem:[#allocation2 + $0x40] sm:$0xff]
        %v400 = vld [vmem:[#allocation2 + $0x48] sm:$0xff]
        %v401 = vld [vmem:[#allocation2 + $0x50] sm:$0xff]
        %v402 = vld [vmem:[#allocation2 + $0x58] sm:$0xff]
        %v403 = vld [vmem:[#allocation2 + $0x60] sm:$0xff]
        %v404 = vld [vmem:[#allocation2 + $0x68] sm:$0xff]
        %v405 = vld [vmem:[#allocation2 + $0x70] sm:$0xff]
        %v406 = vld [vmem:[#allocation2 + $0x78] sm:$0xff]
        %v407 = vld [vmem:[#allocation2 + $0x80] sm:$0xff]
        %v408 = vld [vmem:[#allocation2 + $0x88] sm:$0xff]
        %v409 = vld [vmem:[#allocation2 + $0x90] sm:$0xff]
        %v410 = vld [vmem:[#allocation2 + $0x98] sm:$0xff]
        %v411 = vld [vmem:[#allocation2 + $0xa0] sm:$0xff]
        %v412 = vld [vmem:[#allocation2 + $0xa8] sm:$0xff]
        %v413 = vld [vmem:[#allocation2 + $0xb0] sm:$0xff]
        %v414 = vld [vmem:[#allocation2 + $0xb8] sm:$0xff]
        %v415 = vld [vmem:[#allocation2 + $0xc0] sm:$0xff]
        %v416 = vld [vmem:[#allocation2 + $0xc8] sm:$0xff]
        %v417 = vld [vmem:[#allocation2 + $0xd0] sm:$0xff]
        %v418 = vld [vmem:[#allocation2 + $0xd8] sm:$0xff]
        %v419 = vld [vmem:[#allocation2 + $0xe0] sm:$0xff]
        %v420 = vld [vmem:[#allocation2 + $0xe8] sm:$0xff]
        %v421 = vld [vmem:[#allocation2 + $0xf0] sm:$0xff]
        %v422 = vld [vmem:[#allocation2 + $0xf8] sm:$0xff]
        %v423 = vld [vmem:[#allocation2 + $0x100] sm:$0xff]
        %v424 = vld [vmem:[#allocation2 + $0x108] sm:$0xff]
        %v425 = vld [vmem:[#allocation2 + $0x110] sm:$0xff]
        %v426 = vld [vmem:[#allocation2 + $0x118] sm:$0xff]
        %v427 = vld [vmem:[#allocation2 + $0x120] sm:$0xff]
        %v428 = vld [vmem:[#allocation2 + $0x128] sm:$0xff]
        %v429 = vld [vmem:[#allocation2 + $0x130] sm:$0xff]
        %v430 = vld [vmem:[#allocation2 + $0x138] sm:$0xff]
        %v431 = vld [vmem:[#allocation2 + $0x140] sm:$0xff]
        %v432 = vld [vmem:[#allocation2 + $0x148] sm:$0xff]
        %v433 = vld [vmem:[#allocation2 + $0x150] sm:$0xff]
        %v434 = vld [vmem:[#allocation2 + $0x158] sm:$0xff]
        %v435 = vld [vmem:[#allocation2 + $0x160] sm:$0xff]
        %v436 = vld [vmem:[#allocation2 + $0x168] sm:$0xff]
        %v437 = vld [vmem:[#allocation2 + $0x170] sm:$0xff]
        %v438 = vld [vmem:[#allocation2 + $0x178] sm:$0xff]
        %v439 = vld [vmem:[#allocation2 + $0x180] sm:$0xff]
        %v440 = vld [vmem:[#allocation2 + $0x188] sm:$0xff]
        %v441 = vld [vmem:[#allocation2 + $0x190] sm:$0xff]
        %v442 = vld [vmem:[#allocation2 + $0x198] sm:$0xff]
        %v443 = vld [vmem:[#allocation2 + $0x1a0] sm:$0xff]
        %v444 = vld [vmem:[#allocation2 + $0x1a8] sm:$0xff]
        %v445 = vld [vmem:[#allocation2 + $0x1b0] sm:$0xff]
        %v446 = vld [vmem:[#allocation2 + $0x1b8] sm:$0xff]
        %v447 = vld [vmem:[#allocation2 + $0x1c0] sm:$0xff]
        %v448 = vld [vmem:[#allocation2 + $0x1c8] sm:$0xff]
        %v449 = vld [vmem:[#allocation2 + $0x1d0] sm:$0xff]
        %v450 = vld [vmem:[#allocation2 + $0x1d8] sm:$0xff]
        %v451 = vld [vmem:[#allocation2 + $0x1e0] sm:$0xff]
        %v452 = vld [vmem:[#allocation2 + $0x1e8] sm:$0xff]
        %v453 = vld [vmem:[#allocation2 + $0x1f0] sm:$0xff]
        %v454 = vld [vmem:[#allocation2 + $0x1f8] sm:$0xff]
        %v455 = vld [vmem:[%s242] sm:$0xff]
        %v456 = vld [vmem:[%s242 + $0x8] sm:$0xff]
        %v457 = vld [vmem:[%s242 + $0x10] sm:$0xff]
        %v458 = vld [vmem:[%s242 + $0x18] sm:$0xff]
        %v459 = vld [vmem:[%s242 + $0x20] sm:$0xff]
        %v460 = vld [vmem:[%s242 + $0x28] sm:$0xff]
        %v461 = vld [vmem:[%s242 + $0x30] sm:$0xff]
        %v462 = vld [vmem:[%s242 + $0x38] sm:$0xff]
        %v463 = vld [vmem:[%s242 + $0x40] sm:$0xff]
        %v464 = vld [vmem:[%s242 + $0x48] sm:$0xff]
        %v465 = vld [vmem:[%s242 + $0x50] sm:$0xff]
        %v466 = vld [vmem:[%s242 + $0x58] sm:$0xff]
        %v467 = vld [vmem:[%s242 + $0x60] sm:$0xff]
        %v468 = vld [vmem:[%s242 + $0x68] sm:$0xff]
        %v469 = vld [vmem:[%s242 + $0x70] sm:$0xff]
        %v470 = vld [vmem:[%s242 + $0x78] sm:$0xff]
        %v471 = vld [vmem:[%s242 + $0x80] sm:$0xff]
        %v472 = vld [vmem:[%s242 + $0x88] sm:$0xff]
        %v473 = vld [vmem:[%s242 + $0x90] sm:$0xff]
        %v474 = vld [vmem:[%s242 + $0x98] sm:$0xff]
        %v475 = vld [vmem:[%s242 + $0xa0] sm:$0xff]
        %v476 = vld [vmem:[%s242 + $0xa8] sm:$0xff]
        %v477 = vld [vmem:[%s242 + $0xb0] sm:$0xff]
        %v478 = vld [vmem:[%s242 + $0xb8] sm:$0xff]
        %v479 = vld [vmem:[%s242 + $0xc0] sm:$0xff]
        %v480 = vld [vmem:[%s242 + $0xc8] sm:$0xff]
        %v481 = vld [vmem:[%s242 + $0xd0] sm:$0xff]
        %v482 = vld [vmem:[%s242 + $0xd8] sm:$0xff]
        %v483 = vld [vmem:[%s242 + $0xe0] sm:$0xff]
        %v484 = vld [vmem:[%s242 + $0xe8] sm:$0xff]
        %v485 = vld [vmem:[%s242 + $0xf0] sm:$0xff]
        %v486 = vld [vmem:[%s242 + $0xf8] sm:$0xff]
        %v487 = vld [vmem:[%s242 + $0x100] sm:$0xff]
        %v488 = vld [vmem:[%s242 + $0x108] sm:$0xff]
        %v489 = vld [vmem:[%s242 + $0x110] sm:$0xff]
        %v490 = vld [vmem:[%s242 + $0x118] sm:$0xff]
        %v491 = vld [vmem:[%s242 + $0x120] sm:$0xff]
        %v492 = vld [vmem:[%s242 + $0x128] sm:$0xff]
        %v493 = vld [vmem:[%s242 + $0x130] sm:$0xff]
        %v494 = vld [vmem:[%s242 + $0x138] sm:$0xff]
        %v495 = vld [vmem:[%s242 + $0x140] sm:$0xff]
        %v496 = vld [vmem:[%s242 + $0x148] sm:$0xff]
        %v497 = vld [vmem:[%s242 + $0x150] sm:$0xff]
        %v498 = vld [vmem:[%s242 + $0x158] sm:$0xff]
        %v499 = vld [vmem:[%s242 + $0x160] sm:$0xff]
        %v500 = vld [vmem:[%s242 + $0x168] sm:$0xff]
        %v501 = vld [vmem:[%s242 + $0x170] sm:$0xff]
        %v502 = vld [vmem:[%s242 + $0x178] sm:$0xff]
        %v503 = vld [vmem:[%s242 + $0x180] sm:$0xff]
        %v504 = vld [vmem:[%s242 + $0x188] sm:$0xff]
        %v505 = vld [vmem:[%s242 + $0x190] sm:$0xff]
        %v506 = vld [vmem:[%s242 + $0x198] sm:$0xff]
        %v507 = vld [vmem:[%s242 + $0x1a0] sm:$0xff]
        %v508 = vld [vmem:[%s242 + $0x1a8] sm:$0xff]
        %v509 = vld [vmem:[%s242 + $0x1b0] sm:$0xff]
        %v510 = vld [vmem:[%s242 + $0x1b8] sm:$0xff]
        %v511 = vld [vmem:[%s242 + $0x1c0] sm:$0xff]
        %v512 = vld [vmem:[%s242 + $0x1c8] sm:$0xff]
        %v513 = vld [vmem:[%s242 + $0x1d0] sm:$0xff]
        %v514 = vld [vmem:[%s242 + $0x1d8] sm:$0xff]
        %v515 = vld [vmem:[%s242 + $0x1e0] sm:$0xff]
        %v516 = vld [vmem:[%s242 + $0x1e8] sm:$0xff]
        %v517 = vld [vmem:[%s242 + $0x1f0] sm:$0xff]
        %v518 = vld [vmem:[%s242 + $0x1f8] sm:$0xff]
        %v583 = vunpack.c.l.b16 %v455
        %v584 = vunpack.c.h.b16 %v455
        %v585 = vunpack.c.l.b16 %v456
        %v586 = vunpack.c.h.b16 %v456
        %v587 = vunpack.c.l.b16 %v457
        %v588 = vunpack.c.h.b16 %v457
        %v589 = vunpack.c.l.b16 %v458
        %v590 = vunpack.c.h.b16 %v458
        %v591 = vunpack.c.l.b16 %v459
        %v592 = vunpack.c.h.b16 %v459
        %v593 = vunpack.c.l.b16 %v460
        %v594 = vunpack.c.h.b16 %v460
        %v595 = vunpack.c.l.b16 %v461
        %v596 = vunpack.c.h.b16 %v461
        %v597 = vunpack.c.l.b16 %v462
        %v598 = vunpack.c.h.b16 %v462
        %v599 = vunpack.c.l.b16 %v463
        %v600 = vunpack.c.h.b16 %v463
        %v601 = vunpack.c.l.b16 %v464
        %v602 = vunpack.c.h.b16 %v464
        %v603 = vunpack.c.l.b16 %v465
        %v604 = vunpack.c.h.b16 %v465
        %v605 = vunpack.c.l.b16 %v466
        %v606 = vunpack.c.h.b16 %v466
        %v607 = vunpack.c.l.b16 %v467
        %v608 = vunpack.c.h.b16 %v467
        %v609 = vunpack.c.l.b16 %v468
        %v610 = vunpack.c.h.b16 %v468
        %v611 = vunpack.c.l.b16 %v469
        %v612 = vunpack.c.h.b16 %v469
        %v613 = vunpack.c.l.b16 %v470
        %v614 = vunpack.c.h.b16 %v470
        %v615 = vunpack.c.l.b16 %v471
        %v616 = vunpack.c.h.b16 %v471
        %v617 = vunpack.c.l.b16 %v472
        %v618 = vunpack.c.h.b16 %v472
        %v619 = vunpack.c.l.b16 %v473
        %v620 = vunpack.c.h.b16 %v473
        %v621 = vunpack.c.l.b16 %v474
        %v622 = vunpack.c.h.b16 %v474
        %v623 = vunpack.c.l.b16 %v475
        %v624 = vunpack.c.h.b16 %v475
        %v625 = vunpack.c.l.b16 %v476
        %v626 = vunpack.c.h.b16 %v476
        %v627 = vunpack.c.l.b16 %v477
        %v628 = vunpack.c.h.b16 %v477
        %v629 = vunpack.c.l.b16 %v478
        %v630 = vunpack.c.h.b16 %v478
        %v631 = vunpack.c.l.b16 %v479
        %v632 = vunpack.c.h.b16 %v479
        %v633 = vunpack.c.l.b16 %v480
        %v634 = vunpack.c.h.b16 %v480
        %v635 = vunpack.c.l.b16 %v481
        %v636 = vunpack.c.h.b16 %v481
        %v637 = vunpack.c.l.b16 %v482
        %v638 = vunpack.c.h.b16 %v482
        %v639 = vunpack.c.l.b16 %v483
        %v640 = vunpack.c.h.b16 %v483
        %v641 = vunpack.c.l.b16 %v484
        %v642 = vunpack.c.h.b16 %v484
        %v643 = vunpack.c.l.b16 %v485
        %v644 = vunpack.c.h.b16 %v485
        %v645 = vunpack.c.l.b16 %v486
        %v646 = vunpack.c.h.b16 %v486
        %v647 = vunpack.c.l.b16 %v487
        %v648 = vunpack.c.h.b16 %v487
        %v649 = vunpack.c.l.b16 %v488
        %v650 = vunpack.c.h.b16 %v488
        %v651 = vunpack.c.l.b16 %v489
        %v652 = vunpack.c.h.b16 %v489
        %v653 = vunpack.c.l.b16 %v490
        %v654 = vunpack.c.h.b16 %v490
        %v655 = vunpack.c.l.b16 %v491
        %v656 = vunpack.c.h.b16 %v491
        %v657 = vunpack.c.l.b16 %v492
        %v658 = vunpack.c.h.b16 %v492
        %v659 = vunpack.c.l.b16 %v493
        %v660 = vunpack.c.h.b16 %v493
        %v661 = vunpack.c.l.b16 %v494
        %v662 = vunpack.c.h.b16 %v494
        %v663 = vunpack.c.l.b16 %v495
        %v664 = vunpack.c.h.b16 %v495
        %v665 = vunpack.c.l.b16 %v496
        %v666 = vunpack.c.h.b16 %v496
        %v667 = vunpack.c.l.b16 %v497
        %v668 = vunpack.c.h.b16 %v497
        %v669 = vunpack.c.l.b16 %v498
        %v670 = vunpack.c.h.b16 %v498
        %v671 = vunpack.c.l.b16 %v499
        %v672 = vunpack.c.h.b16 %v499
        %v673 = vunpack.c.l.b16 %v500
        %v674 = vunpack.c.h.b16 %v500
        %v675 = vunpack.c.l.b16 %v501
        %v676 = vunpack.c.h.b16 %v501
        %v677 = vunpack.c.l.b16 %v502
        %v678 = vunpack.c.h.b16 %v502
        %v679 = vunpack.c.l.b16 %v503
        %v680 = vunpack.c.h.b16 %v503
        %v681 = vunpack.c.l.b16 %v504
        %v682 = vunpack.c.h.b16 %v504
        %v683 = vunpack.c.l.b16 %v505
        %v684 = vunpack.c.h.b16 %v505
        %v685 = vunpack.c.l.b16 %v506
        %v686 = vunpack.c.h.b16 %v506
        %v687 = vunpack.c.l.b16 %v507
        %v688 = vunpack.c.h.b16 %v507
        %v689 = vunpack.c.l.b16 %v508
        %v690 = vunpack.c.h.b16 %v508
        %v691 = vunpack.c.l.b16 %v509
        %v692 = vunpack.c.h.b16 %v509
        %v693 = vunpack.c.l.b16 %v510
        %v694 = vunpack.c.h.b16 %v510
        %v695 = vunpack.c.l.b16 %v511
        %v696 = vunpack.c.h.b16 %v511
        %v697 = vunpack.c.l.b16 %v512
        %v698 = vunpack.c.h.b16 %v512
        %v699 = vunpack.c.l.b16 %v513
        %v700 = vunpack.c.h.b16 %v513
        %v701 = vunpack.c.l.b16 %v514
        %v702 = vunpack.c.h.b16 %v514
        %v703 = vunpack.c.l.b16 %v515
        %v704 = vunpack.c.h.b16 %v515
        %v705 = vunpack.c.l.b16 %v516
        %v706 = vunpack.c.h.b16 %v516
        %v707 = vunpack.c.l.b16 %v517
        %v708 = vunpack.c.h.b16 %v517
        %v709 = vunpack.c.l.b16 %v518
        %v710 = vunpack.c.h.b16 %v518
        %v711 = vpack.c.b16 %v585, %v583
        %v712 = vpack.c.b16 %v586, %v584
        %v713 = vpack.c.b16 %v589, %v587
        %v714 = vpack.c.b16 %v590, %v588
        %v715 = vpack.c.b16 %v593, %v591
        %v716 = vpack.c.b16 %v594, %v592
        %v717 = vpack.c.b16 %v597, %v595
        %v718 = vpack.c.b16 %v598, %v596
        %v719 = vpack.c.b16 %v601, %v599
        %v720 = vpack.c.b16 %v602, %v600
        %v721 = vpack.c.b16 %v605, %v603
        %v722 = vpack.c.b16 %v606, %v604
        %v723 = vpack.c.b16 %v609, %v607
        %v724 = vpack.c.b16 %v610, %v608
        %v725 = vpack.c.b16 %v613, %v611
        %v726 = vpack.c.b16 %v614, %v612
        %v727 = vpack.c.b16 %v617, %v615
        %v728 = vpack.c.b16 %v618, %v616
        %v729 = vpack.c.b16 %v621, %v619
        %v730 = vpack.c.b16 %v622, %v620
        %v731 = vpack.c.b16 %v625, %v623
        %v732 = vpack.c.b16 %v626, %v624
        %v733 = vpack.c.b16 %v629, %v627
        %v734 = vpack.c.b16 %v630, %v628
        %v735 = vpack.c.b16 %v633, %v631
        %v736 = vpack.c.b16 %v634, %v632
        %v737 = vpack.c.b16 %v637, %v635
        %v738 = vpack.c.b16 %v638, %v636
        %v739 = vpack.c.b16 %v641, %v639
        %v740 = vpack.c.b16 %v642, %v640
        %v741 = vpack.c.b16 %v645, %v643
        %v742 = vpack.c.b16 %v646, %v644
        %v743 = vpack.c.b16 %v649, %v647
        %v744 = vpack.c.b16 %v650, %v648
        %v745 = vpack.c.b16 %v653, %v651
        %v746 = vpack.c.b16 %v654, %v652
        %v747 = vpack.c.b16 %v657, %v655
        %v748 = vpack.c.b16 %v658, %v656
        %v749 = vpack.c.b16 %v661, %v659
        %v750 = vpack.c.b16 %v662, %v660
        %v751 = vpack.c.b16 %v665, %v663
        %v752 = vpack.c.b16 %v666, %v664
        %v753 = vpack.c.b16 %v669, %v667
        %v754 = vpack.c.b16 %v670, %v668
        %v755 = vpack.c.b16 %v673, %v671
        %v756 = vpack.c.b16 %v674, %v672
        %v757 = vpack.c.b16 %v677, %v675
        %v758 = vpack.c.b16 %v678, %v676
        %v759 = vpack.c.b16 %v681, %v679
        %v760 = vpack.c.b16 %v682, %v680
        %v761 = vpack.c.b16 %v685, %v683
        %v762 = vpack.c.b16 %v686, %v684
        %v763 = vpack.c.b16 %v689, %v687
        %v764 = vpack.c.b16 %v690, %v688
        %v765 = vpack.c.b16 %v693, %v691
        %v766 = vpack.c.b16 %v694, %v692
        %v767 = vpack.c.b16 %v697, %v695
        %v768 = vpack.c.b16 %v698, %v696
        %v769 = vpack.c.b16 %v701, %v699
        %v770 = vpack.c.b16 %v702, %v700
        %v771 = vpack.c.b16 %v705, %v703
        %v772 = vpack.c.b16 %v706, %v704
        %v773 = vpack.c.b16 %v709, %v707
        %v774 = vpack.c.b16 %v710, %v708
        %v871 = vunpack.c.l.b16 %v359
        %v872 = vunpack.c.l.b16 %v360
        %v873 = vunpack.c.l.b16 %v361
        %v874 = vunpack.c.l.b16 %v362
        %v875 = vunpack.c.l.b16 %v363
        %v876 = vunpack.c.l.b16 %v364
        %v877 = vunpack.c.l.b16 %v365
        %v878 = vunpack.c.l.b16 %v366
        %v879 = vunpack.c.l.b16 %v367
        %v880 = vunpack.c.l.b16 %v368
        %v881 = vunpack.c.l.b16 %v369
        %v882 = vunpack.c.l.b16 %v370
        %v883 = vunpack.c.l.b16 %v371
        %v884 = vunpack.c.l.b16 %v372
        %v885 = vunpack.c.l.b16 %v373
        %v886 = vunpack.c.l.b16 %v374
        %v887 = vunpack.c.l.b16 %v375
        %v888 = vunpack.c.l.b16 %v376
        %v889 = vunpack.c.l.b16 %v377
        %v890 = vunpack.c.l.b16 %v378
        %v891 = vunpack.c.l.b16 %v379
        %v892 = vunpack.c.l.b16 %v380
        %v893 = vunpack.c.l.b16 %v381
        %v894 = vunpack.c.l.b16 %v382
        %v895 = vunpack.c.l.b16 %v383
        %v896 = vunpack.c.l.b16 %v384
        %v897 = vunpack.c.l.b16 %v385
        %v898 = vunpack.c.l.b16 %v386
        %v899 = vunpack.c.l.b16 %v387
        %v900 = vunpack.c.l.b16 %v388
        %v901 = vunpack.c.l.b16 %v389
        %v902 = vunpack.c.l.b16 %v390
        %v903 = vpack.c.b16 %v872, %v871
        %v904 = vpack.c.b16 %v874, %v873
        %v905 = vpack.c.b16 %v876, %v875
        %v906 = vpack.c.b16 %v878, %v877
        %v907 = vpack.c.b16 %v880, %v879
        %v908 = vpack.c.b16 %v882, %v881
        %v909 = vpack.c.b16 %v884, %v883
        %v910 = vpack.c.b16 %v886, %v885
        %v911 = vpack.c.b16 %v888, %v887
        %v912 = vpack.c.b16 %v890, %v889
        %v913 = vpack.c.b16 %v892, %v891
        %v914 = vpack.c.b16 %v894, %v893
        %v915 = vpack.c.b16 %v896, %v895
        %v916 = vpack.c.b16 %v898, %v897
        %v917 = vpack.c.b16 %v900, %v899
        %v918 = vpack.c.b16 %v902, %v901
        %935 = vmatpush.bf16.msra.mxu0 %v910
        %936 = vmatpush.bf16.msra.mxu0 %v909
        %937 = vmatpush.bf16.msra.mxu0 %v908
        %938 = vmatpush.bf16.msra.mxu0 %v907
        %939 = vmatpush.bf16.msra.mxu0 %v906
        %940 = vmatpush.bf16.msra.mxu0 %v905
        %941 = vmatpush.bf16.msra.mxu0 %v904
        %942 = vmatpush.bf16.msra.mxu0 %v903
        %943 = vmatmul.bf16.gmra.mxu0 %v711
        %v944 = vpop.f32.mrf.mxu0
        %v945 = vadd.f32 0.0, %v944
        %v946 = vpop.f32.mrf.mxu0
        %v947 = vadd.f32 0.0, %v946
        %948 = vmatmul.bf16.gmra.mxu0 %v713
        %v949 = vpop.f32.mrf.mxu0
        %v950 = vadd.f32 0.0, %v949
        %v951 = vpop.f32.mrf.mxu0
        %v952 = vadd.f32 0.0, %v951
        %953 = vmatmul.bf16.gmra.mxu0 %v715
        %v954 = vpop.f32.mrf.mxu0
        %v955 = vadd.f32 0.0, %v954
        %v956 = vpop.f32.mrf.mxu0
        %v957 = vadd.f32 0.0, %v956
        %958 = vmatmul.bf16.gmra.mxu0 %v717
        %v959 = vpop.f32.mrf.mxu0
        %v960 = vadd.f32 0.0, %v959
        %v961 = vpop.f32.mrf.mxu0
        %v962 = vadd.f32 0.0, %v961
        %963 = vmatmul.bf16.gmra.mxu0 %v719
        %v964 = vpop.f32.mrf.mxu0
        %v965 = vadd.f32 0.0, %v964
        %v966 = vpop.f32.mrf.mxu0
        %v967 = vadd.f32 0.0, %v966
        %968 = vmatmul.bf16.gmra.mxu0 %v721
        %v969 = vpop.f32.mrf.mxu0
        %v970 = vadd.f32 0.0, %v969
        %v971 = vpop.f32.mrf.mxu0
        %v972 = vadd.f32 0.0, %v971
        %973 = vmatmul.bf16.gmra.mxu0 %v723
        %v974 = vpop.f32.mrf.mxu0
        %v975 = vadd.f32 0.0, %v974
        %v976 = vpop.f32.mrf.mxu0
        %v977 = vadd.f32 0.0, %v976
        %978 = vmatmul.bf16.gmra.mxu0 %v725
        %v979 = vpop.f32.mrf.mxu0
        %v980 = vadd.f32 0.0, %v979
        %v981 = vpop.f32.mrf.mxu0
        %v982 = vadd.f32 0.0, %v981
        %983 = vmatmul.bf16.gmra.mxu0 %v727
        %v984 = vpop.f32.mrf.mxu0
        %v985 = vadd.f32 0.0, %v984
        %v986 = vpop.f32.mrf.mxu0
        %v987 = vadd.f32 0.0, %v986
        %988 = vmatmul.bf16.gmra.mxu0 %v729
        %v989 = vpop.f32.mrf.mxu0
        %v990 = vadd.f32 0.0, %v989
        %v991 = vpop.f32.mrf.mxu0
        %v992 = vadd.f32 0.0, %v991
        %993 = vmatmul.bf16.gmra.mxu0 %v731
        %v994 = vpop.f32.mrf.mxu0
        %v995 = vadd.f32 0.0, %v994
        %v996 = vpop.f32.mrf.mxu0
        %v997 = vadd.f32 0.0, %v996
        %998 = vmatmul.bf16.gmra.mxu0 %v733
        %v999 = vpop.f32.mrf.mxu0
        %v1000 = vadd.f32 0.0, %v999
        %v1001 = vpop.f32.mrf.mxu0
        %v1002 = vadd.f32 0.0, %v1001
        %1003 = vmatmul.bf16.gmra.mxu0 %v735
        %v1004 = vpop.f32.mrf.mxu0
        %v1005 = vadd.f32 0.0, %v1004
        %v1006 = vpop.f32.mrf.mxu0
        %v1007 = vadd.f32 0.0, %v1006
        %1008 = vmatmul.bf16.gmra.mxu0 %v737
        %v1009 = vpop.f32.mrf.mxu0
        %v1010 = vadd.f32 0.0, %v1009
        %v1011 = vpop.f32.mrf.mxu0
        %v1012 = vadd.f32 0.0, %v1011
        %1013 = vmatmul.bf16.gmra.mxu0 %v739
        %v1014 = vpop.f32.mrf.mxu0
        %v1015 = vadd.f32 0.0, %v1014
        %v1016 = vpop.f32.mrf.mxu0
        %v1017 = vadd.f32 0.0, %v1016
        %1018 = vmatmul.bf16.gmra.mxu0 %v741
        %v1019 = vpop.f32.mrf.mxu0
        %v1020 = vadd.f32 0.0, %v1019
        %v1021 = vpop.f32.mrf.mxu0
        %v1022 = vadd.f32 0.0, %v1021
        %1023 = vmatmul.bf16.gmra.mxu0 %v743
        %v1024 = vpop.f32.mrf.mxu0
        %v1025 = vadd.f32 0.0, %v1024
        %v1026 = vpop.f32.mrf.mxu0
        %v1027 = vadd.f32 0.0, %v1026
        %1028 = vmatmul.bf16.gmra.mxu0 %v745
        %v1029 = vpop.f32.mrf.mxu0
        %v1030 = vadd.f32 0.0, %v1029
        %v1031 = vpop.f32.mrf.mxu0
        %v1032 = vadd.f32 0.0, %v1031
        %1033 = vmatmul.bf16.gmra.mxu0 %v747
        %v1034 = vpop.f32.mrf.mxu0
        %v1035 = vadd.f32 0.0, %v1034
        %v1036 = vpop.f32.mrf.mxu0
        %v1037 = vadd.f32 0.0, %v1036
        %1038 = vmatmul.bf16.gmra.mxu0 %v749
        %v1039 = vpop.f32.mrf.mxu0
        %v1040 = vadd.f32 0.0, %v1039
        %v1041 = vpop.f32.mrf.mxu0
        %v1042 = vadd.f32 0.0, %v1041
        %1043 = vmatmul.bf16.gmra.mxu0 %v751
        %v1044 = vpop.f32.mrf.mxu0
        %v1045 = vadd.f32 0.0, %v1044
        %v1046 = vpop.f32.mrf.mxu0
        %v1047 = vadd.f32 0.0, %v1046
        %1048 = vmatmul.bf16.gmra.mxu0 %v753
        %v1049 = vpop.f32.mrf.mxu0
        %v1050 = vadd.f32 0.0, %v1049
        %v1051 = vpop.f32.mrf.mxu0
        %v1052 = vadd.f32 0.0, %v1051
        %1053 = vmatmul.bf16.gmra.mxu0 %v755
        %v1054 = vpop.f32.mrf.mxu0
        %v1055 = vadd.f32 0.0, %v1054
        %v1056 = vpop.f32.mrf.mxu0
        %v1057 = vadd.f32 0.0, %v1056
        %1058 = vmatmul.bf16.gmra.mxu0 %v757
        %v1059 = vpop.f32.mrf.mxu0
        %v1060 = vadd.f32 0.0, %v1059
        %v1061 = vpop.f32.mrf.mxu0
        %v1062 = vadd.f32 0.0, %v1061
        %1063 = vmatmul.bf16.gmra.mxu0 %v759
        %v1064 = vpop.f32.mrf.mxu0
        %v1065 = vadd.f32 0.0, %v1064
        %v1066 = vpop.f32.mrf.mxu0
        %v1067 = vadd.f32 0.0, %v1066
        %1068 = vmatmul.bf16.gmra.mxu0 %v761
        %v1069 = vpop.f32.mrf.mxu0
        %v1070 = vadd.f32 0.0, %v1069
        %v1071 = vpop.f32.mrf.mxu0
        %v1072 = vadd.f32 0.0, %v1071
        %1073 = vmatmul.bf16.gmra.mxu0 %v763
        %v1074 = vpop.f32.mrf.mxu0
        %v1075 = vadd.f32 0.0, %v1074
        %v1076 = vpop.f32.mrf.mxu0
        %v1077 = vadd.f32 0.0, %v1076
        %1078 = vmatmul.bf16.gmra.mxu0 %v765
        %v1079 = vpop.f32.mrf.mxu0
        %v1080 = vadd.f32 0.0, %v1079
        %v1081 = vpop.f32.mrf.mxu0
        %v1082 = vadd.f32 0.0, %v1081
        %1083 = vmatmul.bf16.gmra.mxu0 %v767
        %v1084 = vpop.f32.mrf.mxu0
        %v1085 = vadd.f32 0.0, %v1084
        %v1086 = vpop.f32.mrf.mxu0
        %v1087 = vadd.f32 0.0, %v1086
        %1088 = vmatmul.bf16.gmra.mxu0 %v769
        %v1089 = vpop.f32.mrf.mxu0
        %v1090 = vadd.f32 0.0, %v1089
        %v1091 = vpop.f32.mrf.mxu0
        %v1092 = vadd.f32 0.0, %v1091
        %1093 = vmatmul.bf16.gmra.mxu0 %v771
        %v1094 = vpop.f32.mrf.mxu0
        %v1095 = vadd.f32 0.0, %v1094
        %v1096 = vpop.f32.mrf.mxu0
        %v1097 = vadd.f32 0.0, %v1096
        %1098 = vmatmul.bf16.gmra.mxu0 %v773
        %v1099 = vpop.f32.mrf.mxu0
        %v1100 = vadd.f32 0.0, %v1099
        %v1101 = vpop.f32.mrf.mxu0
        %v1102 = vadd.f32 0.0, %v1101
        %1103 = vdwg.mxu0
        %1104 = vmatpush.bf16.msra.mxu0 %v918
        %1105 = vmatpush.bf16.msra.mxu0 %v917
        %1106 = vmatpush.bf16.msra.mxu0 %v916
        %1107 = vmatpush.bf16.msra.mxu0 %v915
        %1108 = vmatpush.bf16.msra.mxu0 %v914
        %1109 = vmatpush.bf16.msra.mxu0 %v913
        %1110 = vmatpush.bf16.msra.mxu0 %v912
        %1111 = vmatpush.bf16.msra.mxu0 %v911
        %1112 = vmatmul.bf16.gmra.mxu0 %v712
        %v1113 = vpop.f32.mrf.mxu0
        %v1114 = vadd.f32 %v945, %v1113
        %v1115 = vpop.f32.mrf.mxu0
        %v1116 = vadd.f32 %v947, %v1115
        %1117 = vmatmul.bf16.gmra.mxu0 %v714
        %v1118 = vpop.f32.mrf.mxu0
        %v1119 = vadd.f32 %v950, %v1118
        %v1120 = vpop.f32.mrf.mxu0
        %v1121 = vadd.f32 %v952, %v1120
        %1122 = vmatmul.bf16.gmra.mxu0 %v716
        %v1123 = vpop.f32.mrf.mxu0
        %v1124 = vadd.f32 %v955, %v1123
        %v1125 = vpop.f32.mrf.mxu0
        %v1126 = vadd.f32 %v957, %v1125
        %1127 = vmatmul.bf16.gmra.mxu0 %v718
        %v1128 = vpop.f32.mrf.mxu0
        %v1129 = vadd.f32 %v960, %v1128
        %v1130 = vpop.f32.mrf.mxu0
        %v1131 = vadd.f32 %v962, %v1130
        %1132 = vmatmul.bf16.gmra.mxu0 %v720
        %v1133 = vpop.f32.mrf.mxu0
        %v1134 = vadd.f32 %v965, %v1133
        %v1135 = vpop.f32.mrf.mxu0
        %v1136 = vadd.f32 %v967, %v1135
        %1137 = vmatmul.bf16.gmra.mxu0 %v722
        %v1138 = vpop.f32.mrf.mxu0
        %v1139 = vadd.f32 %v970, %v1138
        %v1140 = vpop.f32.mrf.mxu0
        %v1141 = vadd.f32 %v972, %v1140
        %1142 = vmatmul.bf16.gmra.mxu0 %v724
        %v1143 = vpop.f32.mrf.mxu0
        %v1144 = vadd.f32 %v975, %v1143
        %v1145 = vpop.f32.mrf.mxu0
        %v1146 = vadd.f32 %v977, %v1145
        %1147 = vmatmul.bf16.gmra.mxu0 %v726
        %v1148 = vpop.f32.mrf.mxu0
        %v1149 = vadd.f32 %v980, %v1148
        %v1150 = vpop.f32.mrf.mxu0
        %v1151 = vadd.f32 %v982, %v1150
        %1152 = vmatmul.bf16.gmra.mxu0 %v728
        %v1153 = vpop.f32.mrf.mxu0
        %v1154 = vadd.f32 %v985, %v1153
        %v1155 = vpop.f32.mrf.mxu0
        %v1156 = vadd.f32 %v987, %v1155
        %1157 = vmatmul.bf16.gmra.mxu0 %v730
        %v1158 = vpop.f32.mrf.mxu0
        %v1159 = vadd.f32 %v990, %v1158
        %v1160 = vpop.f32.mrf.mxu0
        %v1161 = vadd.f32 %v992, %v1160
        %1162 = vmatmul.bf16.gmra.mxu0 %v732
        %v1163 = vpop.f32.mrf.mxu0
        %v1164 = vadd.f32 %v995, %v1163
        %v1165 = vpop.f32.mrf.mxu0
        %v1166 = vadd.f32 %v997, %v1165
        %1167 = vmatmul.bf16.gmra.mxu0 %v734
        %v1168 = vpop.f32.mrf.mxu0
        %v1169 = vadd.f32 %v1000, %v1168
        %v1170 = vpop.f32.mrf.mxu0
        %v1171 = vadd.f32 %v1002, %v1170
        %1172 = vmatmul.bf16.gmra.mxu0 %v736
        %v1173 = vpop.f32.mrf.mxu0
        %v1174 = vadd.f32 %v1005, %v1173
        %v1175 = vpop.f32.mrf.mxu0
        %v1176 = vadd.f32 %v1007, %v1175
        %1177 = vmatmul.bf16.gmra.mxu0 %v738
        %v1178 = vpop.f32.mrf.mxu0
        %v1179 = vadd.f32 %v1010, %v1178
        %v1180 = vpop.f32.mrf.mxu0
        %v1181 = vadd.f32 %v1012, %v1180
        %1182 = vmatmul.bf16.gmra.mxu0 %v740
        %v1183 = vpop.f32.mrf.mxu0
        %v1184 = vadd.f32 %v1015, %v1183
        %v1185 = vpop.f32.mrf.mxu0
        %v1186 = vadd.f32 %v1017, %v1185
        %1187 = vmatmul.bf16.gmra.mxu0 %v742
        %v1188 = vpop.f32.mrf.mxu0
        %v1189 = vadd.f32 %v1020, %v1188
        %v1190 = vpop.f32.mrf.mxu0
        %v1191 = vadd.f32 %v1022, %v1190
        %1192 = vmatmul.bf16.gmra.mxu0 %v744
        %v1193 = vpop.f32.mrf.mxu0
        %v1194 = vadd.f32 %v1025, %v1193
        %v1195 = vpop.f32.mrf.mxu0
        %v1196 = vadd.f32 %v1027, %v1195
        %1197 = vmatmul.bf16.gmra.mxu0 %v746
        %v1198 = vpop.f32.mrf.mxu0
        %v1199 = vadd.f32 %v1030, %v1198
        %v1200 = vpop.f32.mrf.mxu0
        %v1201 = vadd.f32 %v1032, %v1200
        %1202 = vmatmul.bf16.gmra.mxu0 %v748
        %v1203 = vpop.f32.mrf.mxu0
        %v1204 = vadd.f32 %v1035, %v1203
        %v1205 = vpop.f32.mrf.mxu0
        %v1206 = vadd.f32 %v1037, %v1205
        %1207 = vmatmul.bf16.gmra.mxu0 %v750
        %v1208 = vpop.f32.mrf.mxu0
        %v1209 = vadd.f32 %v1040, %v1208
        %v1210 = vpop.f32.mrf.mxu0
        %v1211 = vadd.f32 %v1042, %v1210
        %1212 = vmatmul.bf16.gmra.mxu0 %v752
        %v1213 = vpop.f32.mrf.mxu0
        %v1214 = vadd.f32 %v1045, %v1213
        %v1215 = vpop.f32.mrf.mxu0
        %v1216 = vadd.f32 %v1047, %v1215
        %1217 = vmatmul.bf16.gmra.mxu0 %v754
        %v1218 = vpop.f32.mrf.mxu0
        %v1219 = vadd.f32 %v1050, %v1218
        %v1220 = vpop.f32.mrf.mxu0
        %v1221 = vadd.f32 %v1052, %v1220
        %1222 = vmatmul.bf16.gmra.mxu0 %v756
        %v1223 = vpop.f32.mrf.mxu0
        %v1224 = vadd.f32 %v1055, %v1223
        %v1225 = vpop.f32.mrf.mxu0
        %v1226 = vadd.f32 %v1057, %v1225
        %1227 = vmatmul.bf16.gmra.mxu0 %v758
        %v1228 = vpop.f32.mrf.mxu0
        %v1229 = vadd.f32 %v1060, %v1228
        %v1230 = vpop.f32.mrf.mxu0
        %v1231 = vadd.f32 %v1062, %v1230
        %1232 = vmatmul.bf16.gmra.mxu0 %v760
        %v1233 = vpop.f32.mrf.mxu0
        %v1234 = vadd.f32 %v1065, %v1233
        %v1235 = vpop.f32.mrf.mxu0
        %v1236 = vadd.f32 %v1067, %v1235
        %1237 = vmatmul.bf16.gmra.mxu0 %v762
        %v1238 = vpop.f32.mrf.mxu0
        %v1239 = vadd.f32 %v1070, %v1238
        %v1240 = vpop.f32.mrf.mxu0
        %v1241 = vadd.f32 %v1072, %v1240
        %1242 = vmatmul.bf16.gmra.mxu0 %v764
        %v1243 = vpop.f32.mrf.mxu0
        %v1244 = vadd.f32 %v1075, %v1243
        %v1245 = vpop.f32.mrf.mxu0
        %v1246 = vadd.f32 %v1077, %v1245
        %1247 = vmatmul.bf16.gmra.mxu0 %v766
        %v1248 = vpop.f32.mrf.mxu0
        %v1249 = vadd.f32 %v1080, %v1248
        %v1250 = vpop.f32.mrf.mxu0
        %v1251 = vadd.f32 %v1082, %v1250
        %1252 = vmatmul.bf16.gmra.mxu0 %v768
        %v1253 = vpop.f32.mrf.mxu0
        %v1254 = vadd.f32 %v1085, %v1253
        %v1255 = vpop.f32.mrf.mxu0
        %v1256 = vadd.f32 %v1087, %v1255
        %1257 = vmatmul.bf16.gmra.mxu0 %v770
        %v1258 = vpop.f32.mrf.mxu0
        %v1259 = vadd.f32 %v1090, %v1258
        %v1260 = vpop.f32.mrf.mxu0
        %v1261 = vadd.f32 %v1092, %v1260
        %1262 = vmatmul.bf16.gmra.mxu0 %v772
        %v1263 = vpop.f32.mrf.mxu0
        %v1264 = vadd.f32 %v1095, %v1263
        %v1265 = vpop.f32.mrf.mxu0
        %v1266 = vadd.f32 %v1097, %v1265
        %1267 = vmatmul.bf16.gmra.mxu0 %v774
        %v1268 = vpop.f32.mrf.mxu0
        %v1269 = vadd.f32 %v1100, %v1268
        %v1270 = vpop.f32.mrf.mxu0
        %v1271 = vadd.f32 %v1102, %v1270
        %1272 = vdwg.mxu0
        %v1273 = vadd.f32 %v391, %v1114
        %v1274 = vadd.f32 %v392, %v1116
        %v1275 = vadd.f32 %v393, %v1119
        %v1276 = vadd.f32 %v394, %v1121
        %v1277 = vadd.f32 %v395, %v1124
        %v1278 = vadd.f32 %v396, %v1126
        %v1279 = vadd.f32 %v397, %v1129
        %v1280 = vadd.f32 %v398, %v1131
        %v1281 = vadd.f32 %v399, %v1134
        %v1282 = vadd.f32 %v400, %v1136
        %v1283 = vadd.f32 %v401, %v1139
        %v1284 = vadd.f32 %v402, %v1141
        %v1285 = vadd.f32 %v403, %v1144
        %v1286 = vadd.f32 %v404, %v1146
        %v1287 = vadd.f32 %v405, %v1149
        %v1288 = vadd.f32 %v406, %v1151
        %v1289 = vadd.f32 %v407, %v1154
        %v1290 = vadd.f32 %v408, %v1156
        %v1291 = vadd.f32 %v409, %v1159
        %v1292 = vadd.f32 %v410, %v1161
        %v1293 = vadd.f32 %v411, %v1164
        %v1294 = vadd.f32 %v412, %v1166
        %v1295 = vadd.f32 %v413, %v1169
        %v1296 = vadd.f32 %v414, %v1171
        %v1297 = vadd.f32 %v415, %v1174
        %v1298 = vadd.f32 %v416, %v1176
        %v1299 = vadd.f32 %v417, %v1179
        %v1300 = vadd.f32 %v418, %v1181
        %v1301 = vadd.f32 %v419, %v1184
        %v1302 = vadd.f32 %v420, %v1186
        %v1303 = vadd.f32 %v421, %v1189
        %v1304 = vadd.f32 %v422, %v1191
        %v1305 = vadd.f32 %v423, %v1194
        %v1306 = vadd.f32 %v424, %v1196
        %v1307 = vadd.f32 %v425, %v1199
        %v1308 = vadd.f32 %v426, %v1201
        %v1309 = vadd.f32 %v427, %v1204
        %v1310 = vadd.f32 %v428, %v1206
        %v1311 = vadd.f32 %v429, %v1209
        %v1312 = vadd.f32 %v430, %v1211
        %v1313 = vadd.f32 %v431, %v1214
        %v1314 = vadd.f32 %v432, %v1216
        %v1315 = vadd.f32 %v433, %v1219
        %v1316 = vadd.f32 %v434, %v1221
        %v1317 = vadd.f32 %v435, %v1224
        %v1318 = vadd.f32 %v436, %v1226
        %v1319 = vadd.f32 %v437, %v1229
        %v1320 = vadd.f32 %v438, %v1231
        %v1321 = vadd.f32 %v439, %v1234
        %v1322 = vadd.f32 %v440, %v1236
        %v1323 = vadd.f32 %v441, %v1239
        %v1324 = vadd.f32 %v442, %v1241
        %v1325 = vadd.f32 %v443, %v1244
        %v1326 = vadd.f32 %v444, %v1246
        %v1327 = vadd.f32 %v445, %v1249
        %v1328 = vadd.f32 %v446, %v1251
        %v1329 = vadd.f32 %v447, %v1254
        %v1330 = vadd.f32 %v448, %v1256
        %v1331 = vadd.f32 %v449, %v1259
        %v1332 = vadd.f32 %v450, %v1261
        %v1333 = vadd.f32 %v451, %v1264
        %v1334 = vadd.f32 %v452, %v1266
        %v1335 = vadd.f32 %v453, %v1269
        %v1336 = vadd.f32 %v454, %v1271
        %1337 = vst [vmem:[#allocation2] sm:$0xff] %v1273
        %1338 = vst [vmem:[#allocation2 + $0x8] sm:$0xff] %v1274
        %1339 = vst [vmem:[#allocation2 + $0x10] sm:$0xff] %v1275
        %1340 = vst [vmem:[#allocation2 + $0x18] sm:$0xff] %v1276
        %1341 = vst [vmem:[#allocation2 + $0x20] sm:$0xff] %v1277
        %1342 = vst [vmem:[#allocation2 + $0x28] sm:$0xff] %v1278
        %1343 = vst [vmem:[#allocation2 + $0x30] sm:$0xff] %v1279
        %1344 = vst [vmem:[#allocation2 + $0x38] sm:$0xff] %v1280
        %1345 = vst [vmem:[#allocation2 + $0x40] sm:$0xff] %v1281
        %1346 = vst [vmem:[#allocation2 + $0x48] sm:$0xff] %v1282
        %1347 = vst [vmem:[#allocation2 + $0x50] sm:$0xff] %v1283
        %1348 = vst [vmem:[#allocation2 + $0x58] sm:$0xff] %v1284
        %1349 = vst [vmem:[#allocation2 + $0x60] sm:$0xff] %v1285
        %1350 = vst [vmem:[#allocation2 + $0x68] sm:$0xff] %v1286
        %1351 = vst [vmem:[#allocation2 + $0x70] sm:$0xff] %v1287
        %1352 = vst [vmem:[#allocation2 + $0x78] sm:$0xff] %v1288
        %1353 = vst [vmem:[#allocation2 + $0x80] sm:$0xff] %v1289
        %1354 = vst [vmem:[#allocation2 + $0x88] sm:$0xff] %v1290
        %1355 = vst [vmem:[#allocation2 + $0x90] sm:$0xff] %v1291
        %1356 = vst [vmem:[#allocation2 + $0x98] sm:$0xff] %v1292
        %1357 = vst [vmem:[#allocation2 + $0xa0] sm:$0xff] %v1293
        %1358 = vst [vmem:[#allocation2 + $0xa8] sm:$0xff] %v1294
        %1359 = vst [vmem:[#allocation2 + $0xb0] sm:$0xff] %v1295
        %1360 = vst [vmem:[#allocation2 + $0xb8] sm:$0xff] %v1296
        %1361 = vst [vmem:[#allocation2 + $0xc0] sm:$0xff] %v1297
        %1362 = vst [vmem:[#allocation2 + $0xc8] sm:$0xff] %v1298
        %1363 = vst [vmem:[#allocation2 + $0xd0] sm:$0xff] %v1299
        %1364 = vst [vmem:[#allocation2 + $0xd8] sm:$0xff] %v1300
        %1365 = vst [vmem:[#allocation2 + $0xe0] sm:$0xff] %v1301
        %1366 = vst [vmem:[#allocation2 + $0xe8] sm:$0xff] %v1302
        %1367 = vst [vmem:[#allocation2 + $0xf0] sm:$0xff] %v1303
        %1368 = vst [vmem:[#allocation2 + $0xf8] sm:$0xff] %v1304
        %1369 = vst [vmem:[#allocation2 + $0x100] sm:$0xff] %v1305
        %1370 = vst [vmem:[#allocation2 + $0x108] sm:$0xff] %v1306
        %1371 = vst [vmem:[#allocation2 + $0x110] sm:$0xff] %v1307
        %1372 = vst [vmem:[#allocation2 + $0x118] sm:$0xff] %v1308
        %1373 = vst [vmem:[#allocation2 + $0x120] sm:$0xff] %v1309
        %1374 = vst [vmem:[#allocation2 + $0x128] sm:$0xff] %v1310
        %1375 = vst [vmem:[#allocation2 + $0x130] sm:$0xff] %v1311
        %1376 = vst [vmem:[#allocation2 + $0x138] sm:$0xff] %v1312
        %1377 = vst [vmem:[#allocation2 + $0x140] sm:$0xff] %v1313
        %1378 = vst [vmem:[#allocation2 + $0x148] sm:$0xff] %v1314
        %1379 = vst [vmem:[#allocation2 + $0x150] sm:$0xff] %v1315
        %1380 = vst [vmem:[#allocation2 + $0x158] sm:$0xff] %v1316
        %1381 = vst [vmem:[#allocation2 + $0x160] sm:$0xff] %v1317
        %1382 = vst [vmem:[#allocation2 + $0x168] sm:$0xff] %v1318
        %1383 = vst [vmem:[#allocation2 + $0x170] sm:$0xff] %v1319
        %1384 = vst [vmem:[#allocation2 + $0x178] sm:$0xff] %v1320
        %1385 = vst [vmem:[#allocation2 + $0x180] sm:$0xff] %v1321
        %1386 = vst [vmem:[#allocation2 + $0x188] sm:$0xff] %v1322
        %1387 = vst [vmem:[#allocation2 + $0x190] sm:$0xff] %v1323
        %1388 = vst [vmem:[#allocation2 + $0x198] sm:$0xff] %v1324
        %1389 = vst [vmem:[#allocation2 + $0x1a0] sm:$0xff] %v1325
        %1390 = vst [vmem:[#allocation2 + $0x1a8] sm:$0xff] %v1326
        %1391 = vst [vmem:[#allocation2 + $0x1b0] sm:$0xff] %v1327
        %1392 = vst [vmem:[#allocation2 + $0x1b8] sm:$0xff] %v1328
        %1393 = vst [vmem:[#allocation2 + $0x1c0] sm:$0xff] %v1329
        %1394 = vst [vmem:[#allocation2 + $0x1c8] sm:$0xff] %v1330
        %1395 = vst [vmem:[#allocation2 + $0x1d0] sm:$0xff] %v1331
        %1396 = vst [vmem:[#allocation2 + $0x1d8] sm:$0xff] %v1332
        %1397 = vst [vmem:[#allocation2 + $0x1e0] sm:$0xff] %v1333
        %1398 = vst [vmem:[#allocation2 + $0x1e8] sm:$0xff] %v1334
        %1399 = vst [vmem:[#allocation2 + $0x1f0] sm:$0xff] %v1335
        %1400 = vst [vmem:[#allocation2 + $0x1f8] sm:$0xff] %v1336
        %p1401 = scmp.eq.s32.totalorder %s28, 3
        // Predicated region
        $region57: #{tpu_custom_call.1} parent=35 // pred_check
          %p1402 = pneg %p1401
        $region58: #{tpu_custom_call.1} parent=35 // pred_check_branch
          %1404 = sbr.rel (%p1402) target = $region60
        $region59: #{tpu_custom_call.1} parent=35 // pred_region
          %v1405 = vld [vmem:[#allocation2] sm:$0xff]
          %v1406 = vld [vmem:[#allocation2 + $0x8] sm:$0xff]
          %v1407 = vld [vmem:[#allocation2 + $0x10] sm:$0xff]
          %v1408 = vld [vmem:[#allocation2 + $0x18] sm:$0xff]
          %v1409 = vld [vmem:[#allocation2 + $0x20] sm:$0xff]
          %v1410 = vld [vmem:[#allocation2 + $0x28] sm:$0xff]
          %v1411 = vld [vmem:[#allocation2 + $0x30] sm:$0xff]
          %v1412 = vld [vmem:[#allocation2 + $0x38] sm:$0xff]
          %v1413 = vld [vmem:[#allocation2 + $0x40] sm:$0xff]
          %v1414 = vld [vmem:[#allocation2 + $0x48] sm:$0xff]
          %v1415 = vld [vmem:[#allocation2 + $0x50] sm:$0xff]
          %v1416 = vld [vmem:[#allocation2 + $0x58] sm:$0xff]
          %v1417 = vld [vmem:[#allocation2 + $0x60] sm:$0xff]
          %v1418 = vld [vmem:[#allocation2 + $0x68] sm:$0xff]
          %v1419 = vld [vmem:[#allocation2 + $0x70] sm:$0xff]
          %v1420 = vld [vmem:[#allocation2 + $0x78] sm:$0xff]
          %v1421 = vld [vmem:[#allocation2 + $0x80] sm:$0xff]
          %v1422 = vld [vmem:[#allocation2 + $0x88] sm:$0xff]
          %v1423 = vld [vmem:[#allocation2 + $0x90] sm:$0xff]
          %v1424 = vld [vmem:[#allocation2 + $0x98] sm:$0xff]
          %v1425 = vld [vmem:[#allocation2 + $0xa0] sm:$0xff]
          %v1426 = vld [vmem:[#allocation2 + $0xa8] sm:$0xff]
          %v1427 = vld [vmem:[#allocation2 + $0xb0] sm:$0xff]
          %v1428 = vld [vmem:[#allocation2 + $0xb8] sm:$0xff]
          %v1429 = vld [vmem:[#allocation2 + $0xc0] sm:$0xff]
          %v1430 = vld [vmem:[#allocation2 + $0xc8] sm:$0xff]
          %v1431 = vld [vmem:[#allocation2 + $0xd0] sm:$0xff]
          %v1432 = vld [vmem:[#allocation2 + $0xd8] sm:$0xff]
          %v1433 = vld [vmem:[#allocation2 + $0xe0] sm:$0xff]
          %v1434 = vld [vmem:[#allocation2 + $0xe8] sm:$0xff]
          %v1435 = vld [vmem:[#allocation2 + $0xf0] sm:$0xff]
          %v1436 = vld [vmem:[#allocation2 + $0xf8] sm:$0xff]
          %v1437 = vld [vmem:[#allocation2 + $0x100] sm:$0xff]
          %v1438 = vld [vmem:[#allocation2 + $0x108] sm:$0xff]
          %v1439 = vld [vmem:[#allocation2 + $0x110] sm:$0xff]
          %v1440 = vld [vmem:[#allocation2 + $0x118] sm:$0xff]
          %v1441 = vld [vmem:[#allocation2 + $0x120] sm:$0xff]
          %v1442 = vld [vmem:[#allocation2 + $0x128] sm:$0xff]
          %v1443 = vld [vmem:[#allocation2 + $0x130] sm:$0xff]
          %v1444 = vld [vmem:[#allocation2 + $0x138] sm:$0xff]
          %v1445 = vld [vmem:[#allocation2 + $0x140] sm:$0xff]
          %v1446 = vld [vmem:[#allocation2 + $0x148] sm:$0xff]
          %v1447 = vld [vmem:[#allocation2 + $0x150] sm:$0xff]
          %v1448 = vld [vmem:[#allocation2 + $0x158] sm:$0xff]
          %v1449 = vld [vmem:[#allocation2 + $0x160] sm:$0xff]
          %v1450 = vld [vmem:[#allocation2 + $0x168] sm:$0xff]
          %v1451 = vld [vmem:[#allocation2 + $0x170] sm:$0xff]
          %v1452 = vld [vmem:[#allocation2 + $0x178] sm:$0xff]
          %v1453 = vld [vmem:[#allocation2 + $0x180] sm:$0xff]
          %v1454 = vld [vmem:[#allocation2 + $0x188] sm:$0xff]
          %v1455 = vld [vmem:[#allocation2 + $0x190] sm:$0xff]
          %v1456 = vld [vmem:[#allocation2 + $0x198] sm:$0xff]
          %v1457 = vld [vmem:[#allocation2 + $0x1a0] sm:$0xff]
          %v1458 = vld [vmem:[#allocation2 + $0x1a8] sm:$0xff]
          %v1459 = vld [vmem:[#allocation2 + $0x1b0] sm:$0xff]
          %v1460 = vld [vmem:[#allocation2 + $0x1b8] sm:$0xff]
          %v1461 = vld [vmem:[#allocation2 + $0x1c0] sm:$0xff]
          %v1462 = vld [vmem:[#allocation2 + $0x1c8] sm:$0xff]
          %v1463 = vld [vmem:[#allocation2 + $0x1d0] sm:$0xff]
          %v1464 = vld [vmem:[#allocation2 + $0x1d8] sm:$0xff]
          %v1465 = vld [vmem:[#allocation2 + $0x1e0] sm:$0xff]
          %v1466 = vld [vmem:[#allocation2 + $0x1e8] sm:$0xff]
          %v1467 = vld [vmem:[#allocation2 + $0x1f0] sm:$0xff]
          %v1468 = vld [vmem:[#allocation2 + $0x1f8] sm:$0xff]
          %v1469 = vpack.c.bf16 %v1406, %v1405
          %v1470 = vpack.c.bf16 %v1408, %v1407
          %v1471 = vpack.c.bf16 %v1410, %v1409
          %v1472 = vpack.c.bf16 %v1412, %v1411
          %v1473 = vpack.c.bf16 %v1414, %v1413
          %v1474 = vpack.c.bf16 %v1416, %v1415
          %v1475 = vpack.c.bf16 %v1418, %v1417
          %v1476 = vpack.c.bf16 %v1420, %v1419
          %v1477 = vpack.c.bf16 %v1422, %v1421
          %v1478 = vpack.c.bf16 %v1424, %v1423
          %v1479 = vpack.c.bf16 %v1426, %v1425
          %v1480 = vpack.c.bf16 %v1428, %v1427
          %v1481 = vpack.c.bf16 %v1430, %v1429
          %v1482 = vpack.c.bf16 %v1432, %v1431
          %v1483 = vpack.c.bf16 %v1434, %v1433
          %v1484 = vpack.c.bf16 %v1436, %v1435
          %v1485 = vpack.c.bf16 %v1438, %v1437
          %v1486 = vpack.c.bf16 %v1440, %v1439
          %v1487 = vpack.c.bf16 %v1442, %v1441
          %v1488 = vpack.c.bf16 %v1444, %v1443
          %v1489 = vpack.c.bf16 %v1446, %v1445
          %v1490 = vpack.c.bf16 %v1448, %v1447
          %v1491 = vpack.c.bf16 %v1450, %v1449
          %v1492 = vpack.c.bf16 %v1452, %v1451
          %v1493 = vpack.c.bf16 %v1454, %v1453
          %v1494 = vpack.c.bf16 %v1456, %v1455
          %v1495 = vpack.c.bf16 %v1458, %v1457
          %v1496 = vpack.c.bf16 %v1460, %v1459
          %v1497 = vpack.c.bf16 %v1462, %v1461
          %v1498 = vpack.c.bf16 %v1464, %v1463
          %v1499 = vpack.c.bf16 %v1466, %v1465
          %v1500 = vpack.c.bf16 %v1468, %v1467
          %v1501 = vld [vmem:[#allocation8] sm:$0xff]
          %v1502 = vld [vmem:[#allocation8 + $0x8] sm:$0xff]
          %v1503 = vld [vmem:[#allocation8 + $0x10] sm:$0xff]
          %v1504 = vld [vmem:[#allocation8 + $0x18] sm:$0xff]
          %v1505 = vld [vmem:[#allocation8 + $0x20] sm:$0xff]
          %v1506 = vld [vmem:[#allocation8 + $0x28] sm:$0xff]
          %v1507 = vld [vmem:[#allocation8 + $0x30] sm:$0xff]
          %v1508 = vld [vmem:[#allocation8 + $0x38] sm:$0xff]
          %v1509 = vld [vmem:[#allocation8 + $0x40] sm:$0xff]
          %v1510 = vld [vmem:[#allocation8 + $0x48] sm:$0xff]
          %v1511 = vld [vmem:[#allocation8 + $0x50] sm:$0xff]
          %v1512 = vld [vmem:[#allocation8 + $0x58] sm:$0xff]
          %v1513 = vld [vmem:[#allocation8 + $0x60] sm:$0xff]
          %v1514 = vld [vmem:[#allocation8 + $0x68] sm:$0xff]
          %v1515 = vld [vmem:[#allocation8 + $0x70] sm:$0xff]
          %v1516 = vld [vmem:[#allocation8 + $0x78] sm:$0xff]
          %v1517 = vld [vmem:[#allocation9] sm:$0x3]
          %v1519 = vperm.slane %v1517, 0
          %v1520 = vperm.slane %v1517, 1
          %v1539 = vunpack.c.l.b16 %v1501
          %v1540 = vunpack.c.h.b16 %v1501
          %v1541 = vunpack.c.l.b16 %v1502
          %v1542 = vunpack.c.h.b16 %v1502
          %v1543 = vunpack.c.l.b16 %v1503
          %v1544 = vunpack.c.h.b16 %v1503
          %v1545 = vunpack.c.l.b16 %v1504
          %v1546 = vunpack.c.h.b16 %v1504
          %v1547 = vunpack.c.l.b16 %v1505
          %v1548 = vunpack.c.h.b16 %v1505
          %v1549 = vunpack.c.l.b16 %v1506
          %v1550 = vunpack.c.h.b16 %v1506
          %v1551 = vunpack.c.l.b16 %v1507
          %v1552 = vunpack.c.h.b16 %v1507
          %v1553 = vunpack.c.l.b16 %v1508
          %v1554 = vunpack.c.h.b16 %v1508
          %v1555 = vunpack.c.l.b16 %v1509
          %v1556 = vunpack.c.h.b16 %v1509
          %v1557 = vunpack.c.l.b16 %v1510
          %v1558 = vunpack.c.h.b16 %v1510
          %v1559 = vunpack.c.l.b16 %v1511
          %v1560 = vunpack.c.h.b16 %v1511
          %v1561 = vunpack.c.l.b16 %v1512
          %v1562 = vunpack.c.h.b16 %v1512
          %v1563 = vunpack.c.l.b16 %v1513
          %v1564 = vunpack.c.h.b16 %v1513
          %v1565 = vunpack.c.l.b16 %v1514
          %v1566 = vunpack.c.h.b16 %v1514
          %v1567 = vunpack.c.l.b16 %v1515
          %v1568 = vunpack.c.h.b16 %v1515
          %v1569 = vunpack.c.l.b16 %v1516
          %v1570 = vunpack.c.h.b16 %v1516
          %v1571 = vpack.c.b16 %v1541, %v1539
          %v1572 = vpack.c.b16 %v1542, %v1540
          %v1573 = vpack.c.b16 %v1545, %v1543
          %v1574 = vpack.c.b16 %v1546, %v1544
          %v1575 = vpack.c.b16 %v1549, %v1547
          %v1576 = vpack.c.b16 %v1550, %v1548
          %v1577 = vpack.c.b16 %v1553, %v1551
          %v1578 = vpack.c.b16 %v1554, %v1552
          %v1579 = vpack.c.b16 %v1557, %v1555
          %v1580 = vpack.c.b16 %v1558, %v1556
          %v1581 = vpack.c.b16 %v1561, %v1559
          %v1582 = vpack.c.b16 %v1562, %v1560
          %v1583 = vpack.c.b16 %v1565, %v1563
          %v1584 = vpack.c.b16 %v1566, %v1564
          %v1585 = vpack.c.b16 %v1569, %v1567
          %v1586 = vpack.c.b16 %v1570, %v1568
          %1603 = vmatpush.bf16.msra.mxu0 %v1585
          %1604 = vmatpush.bf16.msra.mxu0 %v1583
          %1605 = vmatpush.bf16.msra.mxu0 %v1581
          %1606 = vmatpush.bf16.msra.mxu0 %v1579
          %1607 = vmatpush.bf16.msra.mxu0 %v1577
          %1608 = vmatpush.bf16.msra.mxu0 %v1575
          %1609 = vmatpush.bf16.msra.mxu0 %v1573
          %1610 = vmatpush.bf16.msra.mxu0 %v1571
          %1611 = vmatmul.bf16.gmra.mxu0 %v1469
          %v1612 = vpop.f32.mrf.mxu0
          %v1613 = vadd.f32 %v1519, %v1612
          %v1614 = vpop.f32.mrf.mxu0
          %v1615 = vadd.f32 %v1519, %v1614
          %1616 = vmatmul.bf16.gmra.mxu0 %v1470
          %v1617 = vpop.f32.mrf.mxu0
          %v1618 = vadd.f32 %v1519, %v1617
          %v1619 = vpop.f32.mrf.mxu0
          %v1620 = vadd.f32 %v1519, %v1619
          %1621 = vmatmul.bf16.gmra.mxu0 %v1471
          %v1622 = vpop.f32.mrf.mxu0
          %v1623 = vadd.f32 %v1519, %v1622
          %v1624 = vpop.f32.mrf.mxu0
          %v1625 = vadd.f32 %v1519, %v1624
          %1626 = vmatmul.bf16.gmra.mxu0 %v1472
          %v1627 = vpop.f32.mrf.mxu0
          %v1628 = vadd.f32 %v1519, %v1627
          %v1629 = vpop.f32.mrf.mxu0
          %v1630 = vadd.f32 %v1519, %v1629
          %1631 = vmatmul.bf16.gmra.mxu0 %v1473
          %v1632 = vpop.f32.mrf.mxu0
          %v1633 = vadd.f32 %v1519, %v1632
          %v1634 = vpop.f32.mrf.mxu0
          %v1635 = vadd.f32 %v1519, %v1634
          %1636 = vmatmul.bf16.gmra.mxu0 %v1474
          %v1637 = vpop.f32.mrf.mxu0
          %v1638 = vadd.f32 %v1519, %v1637
          %v1639 = vpop.f32.mrf.mxu0
          %v1640 = vadd.f32 %v1519, %v1639
          %1641 = vmatmul.bf16.gmra.mxu0 %v1475
          %v1642 = vpop.f32.mrf.mxu0
          %v1643 = vadd.f32 %v1519, %v1642
          %v1644 = vpop.f32.mrf.mxu0
          %v1645 = vadd.f32 %v1519, %v1644
          %1646 = vmatmul.bf16.gmra.mxu0 %v1476
          %v1647 = vpop.f32.mrf.mxu0
          %v1648 = vadd.f32 %v1519, %v1647
          %v1649 = vpop.f32.mrf.mxu0
          %v1650 = vadd.f32 %v1519, %v1649
          %1651 = vmatmul.bf16.gmra.mxu0 %v1477
          %v1652 = vpop.f32.mrf.mxu0
          %v1653 = vadd.f32 %v1519, %v1652
          %v1654 = vpop.f32.mrf.mxu0
          %v1655 = vadd.f32 %v1519, %v1654
          %1656 = vmatmul.bf16.gmra.mxu0 %v1478
          %v1657 = vpop.f32.mrf.mxu0
          %v1658 = vadd.f32 %v1519, %v1657
          %v1659 = vpop.f32.mrf.mxu0
          %v1660 = vadd.f32 %v1519, %v1659
          %1661 = vmatmul.bf16.gmra.mxu0 %v1479
          %v1662 = vpop.f32.mrf.mxu0
          %v1663 = vadd.f32 %v1519, %v1662
          %v1664 = vpop.f32.mrf.mxu0
          %v1665 = vadd.f32 %v1519, %v1664
          %1666 = vmatmul.bf16.gmra.mxu0 %v1480
          %v1667 = vpop.f32.mrf.mxu0
          %v1668 = vadd.f32 %v1519, %v1667
          %v1669 = vpop.f32.mrf.mxu0
          %v1670 = vadd.f32 %v1519, %v1669
          %1671 = vmatmul.bf16.gmra.mxu0 %v1481
          %v1672 = vpop.f32.mrf.mxu0
          %v1673 = vadd.f32 %v1519, %v1672
          %v1674 = vpop.f32.mrf.mxu0
          %v1675 = vadd.f32 %v1519, %v1674
          %1676 = vmatmul.bf16.gmra.mxu0 %v1482
          %v1677 = vpop.f32.mrf.mxu0
          %v1678 = vadd.f32 %v1519, %v1677
          %v1679 = vpop.f32.mrf.mxu0
          %v1680 = vadd.f32 %v1519, %v1679
          %1681 = vmatmul.bf16.gmra.mxu0 %v1483
          %v1682 = vpop.f32.mrf.mxu0
          %v1683 = vadd.f32 %v1519, %v1682
          %v1684 = vpop.f32.mrf.mxu0
          %v1685 = vadd.f32 %v1519, %v1684
          %1686 = vmatmul.bf16.gmra.mxu0 %v1484
          %v1687 = vpop.f32.mrf.mxu0
          %v1688 = vadd.f32 %v1519, %v1687
          %v1689 = vpop.f32.mrf.mxu0
          %v1690 = vadd.f32 %v1519, %v1689
          %1691 = vmatmul.bf16.gmra.mxu0 %v1485
          %v1692 = vpop.f32.mrf.mxu0
          %v1693 = vadd.f32 %v1519, %v1692
          %v1694 = vpop.f32.mrf.mxu0
          %v1695 = vadd.f32 %v1519, %v1694
          %1696 = vmatmul.bf16.gmra.mxu0 %v1486
          %v1697 = vpop.f32.mrf.mxu0
          %v1698 = vadd.f32 %v1519, %v1697
          %v1699 = vpop.f32.mrf.mxu0
          %v1700 = vadd.f32 %v1519, %v1699
          %1701 = vmatmul.bf16.gmra.mxu0 %v1487
          %v1702 = vpop.f32.mrf.mxu0
          %v1703 = vadd.f32 %v1519, %v1702
          %v1704 = vpop.f32.mrf.mxu0
          %v1705 = vadd.f32 %v1519, %v1704
          %1706 = vmatmul.bf16.gmra.mxu0 %v1488
          %v1707 = vpop.f32.mrf.mxu0
          %v1708 = vadd.f32 %v1519, %v1707
          %v1709 = vpop.f32.mrf.mxu0
          %v1710 = vadd.f32 %v1519, %v1709
          %1711 = vmatmul.bf16.gmra.mxu0 %v1489
          %v1712 = vpop.f32.mrf.mxu0
          %v1713 = vadd.f32 %v1519, %v1712
          %v1714 = vpop.f32.mrf.mxu0
          %v1715 = vadd.f32 %v1519, %v1714
          %1716 = vmatmul.bf16.gmra.mxu0 %v1490
          %v1717 = vpop.f32.mrf.mxu0
          %v1718 = vadd.f32 %v1519, %v1717
          %v1719 = vpop.f32.mrf.mxu0
          %v1720 = vadd.f32 %v1519, %v1719
          %1721 = vmatmul.bf16.gmra.mxu0 %v1491
          %v1722 = vpop.f32.mrf.mxu0
          %v1723 = vadd.f32 %v1519, %v1722
          %v1724 = vpop.f32.mrf.mxu0
          %v1725 = vadd.f32 %v1519, %v1724
          %1726 = vmatmul.bf16.gmra.mxu0 %v1492
          %v1727 = vpop.f32.mrf.mxu0
          %v1728 = vadd.f32 %v1519, %v1727
          %v1729 = vpop.f32.mrf.mxu0
          %v1730 = vadd.f32 %v1519, %v1729
          %1731 = vmatmul.bf16.gmra.mxu0 %v1493
          %v1732 = vpop.f32.mrf.mxu0
          %v1733 = vadd.f32 %v1519, %v1732
          %v1734 = vpop.f32.mrf.mxu0
          %v1735 = vadd.f32 %v1519, %v1734
          %1736 = vmatmul.bf16.gmra.mxu0 %v1494
          %v1737 = vpop.f32.mrf.mxu0
          %v1738 = vadd.f32 %v1519, %v1737
          %v1739 = vpop.f32.mrf.mxu0
          %v1740 = vadd.f32 %v1519, %v1739
          %1741 = vmatmul.bf16.gmra.mxu0 %v1495
          %v1742 = vpop.f32.mrf.mxu0
          %v1743 = vadd.f32 %v1519, %v1742
          %v1744 = vpop.f32.mrf.mxu0
          %v1745 = vadd.f32 %v1519, %v1744
          %1746 = vmatmul.bf16.gmra.mxu0 %v1496
          %v1747 = vpop.f32.mrf.mxu0
          %v1748 = vadd.f32 %v1519, %v1747
          %v1749 = vpop.f32.mrf.mxu0
          %v1750 = vadd.f32 %v1519, %v1749
          %1751 = vmatmul.bf16.gmra.mxu0 %v1497
          %v1752 = vpop.f32.mrf.mxu0
          %v1753 = vadd.f32 %v1519, %v1752
          %v1754 = vpop.f32.mrf.mxu0
          %v1755 = vadd.f32 %v1519, %v1754
          %1756 = vmatmul.bf16.gmra.mxu0 %v1498
          %v1757 = vpop.f32.mrf.mxu0
          %v1758 = vadd.f32 %v1519, %v1757
          %v1759 = vpop.f32.mrf.mxu0
          %v1760 = vadd.f32 %v1519, %v1759
          %1761 = vmatmul.bf16.gmra.mxu0 %v1499
          %v1762 = vpop.f32.mrf.mxu0
          %v1763 = vadd.f32 %v1519, %v1762
          %v1764 = vpop.f32.mrf.mxu0
          %v1765 = vadd.f32 %v1519, %v1764
          %1766 = vmatmul.bf16.gmra.mxu0 %v1500
          %v1767 = vpop.f32.mrf.mxu0
          %v1768 = vadd.f32 %v1519, %v1767
          %v1769 = vpop.f32.mrf.mxu0
          %v1770 = vadd.f32 %v1519, %v1769
          %1771 = vdwg.mxu0
          %1772 = vmatpush.bf16.msra.mxu0 %v1586
          %1773 = vmatpush.bf16.msra.mxu0 %v1584
          %1774 = vmatpush.bf16.msra.mxu0 %v1582
          %1775 = vmatpush.bf16.msra.mxu0 %v1580
          %1776 = vmatpush.bf16.msra.mxu0 %v1578
          %1777 = vmatpush.bf16.msra.mxu0 %v1576
          %1778 = vmatpush.bf16.msra.mxu0 %v1574
          %1779 = vmatpush.bf16.msra.mxu0 %v1572
          %1780 = vmatmul.bf16.gmra.mxu0 %v1469
          %v1781 = vpop.f32.mrf.mxu0
          %v1782 = vadd.f32 %v1520, %v1781
          %v1783 = vpop.f32.mrf.mxu0
          %v1784 = vadd.f32 %v1520, %v1783
          %1785 = vmatmul.bf16.gmra.mxu0 %v1470
          %v1786 = vpop.f32.mrf.mxu0
          %v1787 = vadd.f32 %v1520, %v1786
          %v1788 = vpop.f32.mrf.mxu0
          %v1789 = vadd.f32 %v1520, %v1788
          %1790 = vmatmul.bf16.gmra.mxu0 %v1471
          %v1791 = vpop.f32.mrf.mxu0
          %v1792 = vadd.f32 %v1520, %v1791
          %v1793 = vpop.f32.mrf.mxu0
          %v1794 = vadd.f32 %v1520, %v1793
          %1795 = vmatmul.bf16.gmra.mxu0 %v1472
          %v1796 = vpop.f32.mrf.mxu0
          %v1797 = vadd.f32 %v1520, %v1796
          %v1798 = vpop.f32.mrf.mxu0
          %v1799 = vadd.f32 %v1520, %v1798
          %1800 = vmatmul.bf16.gmra.mxu0 %v1473
          %v1801 = vpop.f32.mrf.mxu0
          %v1802 = vadd.f32 %v1520, %v1801
          %v1803 = vpop.f32.mrf.mxu0
          %v1804 = vadd.f32 %v1520, %v1803
          %1805 = vmatmul.bf16.gmra.mxu0 %v1474
          %v1806 = vpop.f32.mrf.mxu0
          %v1807 = vadd.f32 %v1520, %v1806
          %v1808 = vpop.f32.mrf.mxu0
          %v1809 = vadd.f32 %v1520, %v1808
          %1810 = vmatmul.bf16.gmra.mxu0 %v1475
          %v1811 = vpop.f32.mrf.mxu0
          %v1812 = vadd.f32 %v1520, %v1811
          %v1813 = vpop.f32.mrf.mxu0
          %v1814 = vadd.f32 %v1520, %v1813
          %1815 = vmatmul.bf16.gmra.mxu0 %v1476
          %v1816 = vpop.f32.mrf.mxu0
          %v1817 = vadd.f32 %v1520, %v1816
          %v1818 = vpop.f32.mrf.mxu0
          %v1819 = vadd.f32 %v1520, %v1818
          %1820 = vmatmul.bf16.gmra.mxu0 %v1477
          %v1821 = vpop.f32.mrf.mxu0
          %v1822 = vadd.f32 %v1520, %v1821
          %v1823 = vpop.f32.mrf.mxu0
          %v1824 = vadd.f32 %v1520, %v1823
          %1825 = vmatmul.bf16.gmra.mxu0 %v1478
          %v1826 = vpop.f32.mrf.mxu0
          %v1827 = vadd.f32 %v1520, %v1826
          %v1828 = vpop.f32.mrf.mxu0
          %v1829 = vadd.f32 %v1520, %v1828
          %1830 = vmatmul.bf16.gmra.mxu0 %v1479
          %v1831 = vpop.f32.mrf.mxu0
          %v1832 = vadd.f32 %v1520, %v1831
          %v1833 = vpop.f32.mrf.mxu0
          %v1834 = vadd.f32 %v1520, %v1833
          %1835 = vmatmul.bf16.gmra.mxu0 %v1480
          %v1836 = vpop.f32.mrf.mxu0
          %v1837 = vadd.f32 %v1520, %v1836
          %v1838 = vpop.f32.mrf.mxu0
          %v1839 = vadd.f32 %v1520, %v1838
          %1840 = vmatmul.bf16.gmra.mxu0 %v1481
          %v1841 = vpop.f32.mrf.mxu0
          %v1842 = vadd.f32 %v1520, %v1841
          %v1843 = vpop.f32.mrf.mxu0
          %v1844 = vadd.f32 %v1520, %v1843
          %1845 = vmatmul.bf16.gmra.mxu0 %v1482
          %v1846 = vpop.f32.mrf.mxu0
          %v1847 = vadd.f32 %v1520, %v1846
          %v1848 = vpop.f32.mrf.mxu0
          %v1849 = vadd.f32 %v1520, %v1848
          %1850 = vmatmul.bf16.gmra.mxu0 %v1483
          %v1851 = vpop.f32.mrf.mxu0
          %v1852 = vadd.f32 %v1520, %v1851
          %v1853 = vpop.f32.mrf.mxu0
          %v1854 = vadd.f32 %v1520, %v1853
          %1855 = vmatmul.bf16.gmra.mxu0 %v1484
          %v1856 = vpop.f32.mrf.mxu0
          %v1857 = vadd.f32 %v1520, %v1856
          %v1858 = vpop.f32.mrf.mxu0
          %v1859 = vadd.f32 %v1520, %v1858
          %1860 = vmatmul.bf16.gmra.mxu0 %v1485
          %v1861 = vpop.f32.mrf.mxu0
          %v1862 = vadd.f32 %v1520, %v1861
          %v1863 = vpop.f32.mrf.mxu0
          %v1864 = vadd.f32 %v1520, %v1863
          %1865 = vmatmul.bf16.gmra.mxu0 %v1486
          %v1866 = vpop.f32.mrf.mxu0
          %v1867 = vadd.f32 %v1520, %v1866
          %v1868 = vpop.f32.mrf.mxu0
          %v1869 = vadd.f32 %v1520, %v1868
          %1870 = vmatmul.bf16.gmra.mxu0 %v1487
          %v1871 = vpop.f32.mrf.mxu0
          %v1872 = vadd.f32 %v1520, %v1871
          %v1873 = vpop.f32.mrf.mxu0
          %v1874 = vadd.f32 %v1520, %v1873
          %1875 = vmatmul.bf16.gmra.mxu0 %v1488
          %v1876 = vpop.f32.mrf.mxu0
          %v1877 = vadd.f32 %v1520, %v1876
          %v1878 = vpop.f32.mrf.mxu0
          %v1879 = vadd.f32 %v1520, %v1878
          %1880 = vmatmul.bf16.gmra.mxu0 %v1489
          %v1881 = vpop.f32.mrf.mxu0
          %v1882 = vadd.f32 %v1520, %v1881
          %v1883 = vpop.f32.mrf.mxu0
          %v1884 = vadd.f32 %v1520, %v1883
          %1885 = vmatmul.bf16.gmra.mxu0 %v1490
          %v1886 = vpop.f32.mrf.mxu0
          %v1887 = vadd.f32 %v1520, %v1886
          %v1888 = vpop.f32.mrf.mxu0
          %v1889 = vadd.f32 %v1520, %v1888
          %1890 = vmatmul.bf16.gmra.mxu0 %v1491
          %v1891 = vpop.f32.mrf.mxu0
          %v1892 = vadd.f32 %v1520, %v1891
          %v1893 = vpop.f32.mrf.mxu0
          %v1894 = vadd.f32 %v1520, %v1893
          %1895 = vmatmul.bf16.gmra.mxu0 %v1492
          %v1896 = vpop.f32.mrf.mxu0
          %v1897 = vadd.f32 %v1520, %v1896
          %v1898 = vpop.f32.mrf.mxu0
          %v1899 = vadd.f32 %v1520, %v1898
          %1900 = vmatmul.bf16.gmra.mxu0 %v1493
          %v1901 = vpop.f32.mrf.mxu0
          %v1902 = vadd.f32 %v1520, %v1901
          %v1903 = vpop.f32.mrf.mxu0
          %v1904 = vadd.f32 %v1520, %v1903
          %1905 = vmatmul.bf16.gmra.mxu0 %v1494
          %v1906 = vpop.f32.mrf.mxu0
          %v1907 = vadd.f32 %v1520, %v1906
          %v1908 = vpop.f32.mrf.mxu0
          %v1909 = vadd.f32 %v1520, %v1908
          %1910 = vmatmul.bf16.gmra.mxu0 %v1495
          %v1911 = vpop.f32.mrf.mxu0
          %v1912 = vadd.f32 %v1520, %v1911
          %v1913 = vpop.f32.mrf.mxu0
          %v1914 = vadd.f32 %v1520, %v1913
          %1915 = vmatmul.bf16.gmra.mxu0 %v1496
          %v1916 = vpop.f32.mrf.mxu0
          %v1917 = vadd.f32 %v1520, %v1916
          %v1918 = vpop.f32.mrf.mxu0
          %v1919 = vadd.f32 %v1520, %v1918
          %1920 = vmatmul.bf16.gmra.mxu0 %v1497
          %v1921 = vpop.f32.mrf.mxu0
          %v1922 = vadd.f32 %v1520, %v1921
          %v1923 = vpop.f32.mrf.mxu0
          %v1924 = vadd.f32 %v1520, %v1923
          %1925 = vmatmul.bf16.gmra.mxu0 %v1498
          %v1926 = vpop.f32.mrf.mxu0
          %v1927 = vadd.f32 %v1520, %v1926
          %v1928 = vpop.f32.mrf.mxu0
          %v1929 = vadd.f32 %v1520, %v1928
          %1930 = vmatmul.bf16.gmra.mxu0 %v1499
          %v1931 = vpop.f32.mrf.mxu0
          %v1932 = vadd.f32 %v1520, %v1931
          %v1933 = vpop.f32.mrf.mxu0
          %v1934 = vadd.f32 %v1520, %v1933
          %1935 = vmatmul.bf16.gmra.mxu0 %v1500
          %v1936 = vpop.f32.mrf.mxu0
          %v1937 = vadd.f32 %v1520, %v1936
          %v1938 = vpop.f32.mrf.mxu0
          %v1939 = vadd.f32 %v1520, %v1938
          %1940 = vdwg.mxu0
          %v1941 = vmax.f32 %v1613, 0.0
          %v1942 = vmax.f32 %v1782, 0.0
          %v1943 = vmax.f32 %v1615, 0.0
          %v1944 = vmax.f32 %v1784, 0.0
          %v1945 = vmax.f32 %v1618, 0.0
          %v1946 = vmax.f32 %v1787, 0.0
          %v1947 = vmax.f32 %v1620, 0.0
          %v1948 = vmax.f32 %v1789, 0.0
          %v1949 = vmax.f32 %v1623, 0.0
          %v1950 = vmax.f32 %v1792, 0.0
          %v1951 = vmax.f32 %v1625, 0.0
          %v1952 = vmax.f32 %v1794, 0.0
          %v1953 = vmax.f32 %v1628, 0.0
          %v1954 = vmax.f32 %v1797, 0.0
          %v1955 = vmax.f32 %v1630, 0.0
          %v1956 = vmax.f32 %v1799, 0.0
          %v1957 = vmax.f32 %v1633, 0.0
          %v1958 = vmax.f32 %v1802, 0.0
          %v1959 = vmax.f32 %v1635, 0.0
          %v1960 = vmax.f32 %v1804, 0.0
          %v1961 = vmax.f32 %v1638, 0.0
          %v1962 = vmax.f32 %v1807, 0.0
          %v1963 = vmax.f32 %v1640, 0.0
          %v1964 = vmax.f32 %v1809, 0.0
          %v1965 = vmax.f32 %v1643, 0.0
          %v1966 = vmax.f32 %v1812, 0.0
          %v1967 = vmax.f32 %v1645, 0.0
          %v1968 = vmax.f32 %v1814, 0.0
          %v1969 = vmax.f32 %v1648, 0.0
          %v1970 = vmax.f32 %v1817, 0.0
          %v1971 = vmax.f32 %v1650, 0.0
          %v1972 = vmax.f32 %v1819, 0.0
          %v1973 = vmax.f32 %v1653, 0.0
          %v1974 = vmax.f32 %v1822, 0.0
          %v1975 = vmax.f32 %v1655, 0.0
          %v1976 = vmax.f32 %v1824, 0.0
          %v1977 = vmax.f32 %v1658, 0.0
          %v1978 = vmax.f32 %v1827, 0.0
          %v1979 = vmax.f32 %v1660, 0.0
          %v1980 = vmax.f32 %v1829, 0.0
          %v1981 = vmax.f32 %v1663, 0.0
          %v1982 = vmax.f32 %v1832, 0.0
          %v1983 = vmax.f32 %v1665, 0.0
          %v1984 = vmax.f32 %v1834, 0.0
          %v1985 = vmax.f32 %v1668, 0.0
          %v1986 = vmax.f32 %v1837, 0.0
          %v1987 = vmax.f32 %v1670, 0.0
          %v1988 = vmax.f32 %v1839, 0.0
          %v1989 = vmax.f32 %v1673, 0.0
          %v1990 = vmax.f32 %v1842, 0.0
          %v1991 = vmax.f32 %v1675, 0.0
          %v1992 = vmax.f32 %v1844, 0.0
          %v1993 = vmax.f32 %v1678, 0.0
          %v1994 = vmax.f32 %v1847, 0.0
          %v1995 = vmax.f32 %v1680, 0.0
          %v1996 = vmax.f32 %v1849, 0.0
          %v1997 = vmax.f32 %v1683, 0.0
          %v1998 = vmax.f32 %v1852, 0.0
          %v1999 = vmax.f32 %v1685, 0.0
          %v2000 = vmax.f32 %v1854, 0.0
          %v2001 = vmax.f32 %v1688, 0.0
          %v2002 = vmax.f32 %v1857, 0.0
          %v2003 = vmax.f32 %v1690, 0.0
          %v2004 = vmax.f32 %v1859, 0.0
          %v2005 = vmax.f32 %v1693, 0.0
          %v2006 = vmax.f32 %v1862, 0.0
          %v2007 = vmax.f32 %v1695, 0.0
          %v2008 = vmax.f32 %v1864, 0.0
          %v2009 = vmax.f32 %v1698, 0.0
          %v2010 = vmax.f32 %v1867, 0.0
          %v2011 = vmax.f32 %v1700, 0.0
          %v2012 = vmax.f32 %v1869, 0.0
          %v2013 = vmax.f32 %v1703, 0.0
          %v2014 = vmax.f32 %v1872, 0.0
          %v2015 = vmax.f32 %v1705, 0.0
          %v2016 = vmax.f32 %v1874, 0.0
          %v2017 = vmax.f32 %v1708, 0.0
          %v2018 = vmax.f32 %v1877, 0.0
          %v2019 = vmax.f32 %v1710, 0.0
          %v2020 = vmax.f32 %v1879, 0.0
          %v2021 = vmax.f32 %v1713, 0.0
          %v2022 = vmax.f32 %v1882, 0.0
          %v2023 = vmax.f32 %v1715, 0.0
          %v2024 = vmax.f32 %v1884, 0.0
          %v2025 = vmax.f32 %v1718, 0.0
          %v2026 = vmax.f32 %v1887, 0.0
          %v2027 = vmax.f32 %v1720, 0.0
          %v2028 = vmax.f32 %v1889, 0.0
          %v2029 = vmax.f32 %v1723, 0.0
          %v2030 = vmax.f32 %v1892, 0.0
          %v2031 = vmax.f32 %v1725, 0.0
          %v2032 = vmax.f32 %v1894, 0.0
          %v2033 = vmax.f32 %v1728, 0.0
          %v2034 = vmax.f32 %v1897, 0.0
          %v2035 = vmax.f32 %v1730, 0.0
          %v2036 = vmax.f32 %v1899, 0.0
          %v2037 = vmax.f32 %v1733, 0.0
          %v2038 = vmax.f32 %v1902, 0.0
          %v2039 = vmax.f32 %v1735, 0.0
          %v2040 = vmax.f32 %v1904, 0.0
          %v2041 = vmax.f32 %v1738, 0.0
          %v2042 = vmax.f32 %v1907, 0.0
          %v2043 = vmax.f32 %v1740, 0.0
          %v2044 = vmax.f32 %v1909, 0.0
          %v2045 = vmax.f32 %v1743, 0.0
          %v2046 = vmax.f32 %v1912, 0.0
          %v2047 = vmax.f32 %v1745, 0.0
          %v2048 = vmax.f32 %v1914, 0.0
          %v2049 = vmax.f32 %v1748, 0.0
          %v2050 = vmax.f32 %v1917, 0.0
          %v2051 = vmax.f32 %v1750, 0.0
          %v2052 = vmax.f32 %v1919, 0.0
          %v2053 = vmax.f32 %v1753, 0.0
          %v2054 = vmax.f32 %v1922, 0.0
          %v2055 = vmax.f32 %v1755, 0.0
          %v2056 = vmax.f32 %v1924, 0.0
          %v2057 = vmax.f32 %v1758, 0.0
          %v2058 = vmax.f32 %v1927, 0.0
          %v2059 = vmax.f32 %v1760, 0.0
          %v2060 = vmax.f32 %v1929, 0.0
          %v2061 = vmax.f32 %v1763, 0.0
          %v2062 = vmax.f32 %v1932, 0.0
          %v2063 = vmax.f32 %v1765, 0.0
          %v2064 = vmax.f32 %v1934, 0.0
          %v2065 = vmax.f32 %v1768, 0.0
          %v2066 = vmax.f32 %v1937, 0.0
          %v2067 = vmax.f32 %v1770, 0.0
          %v2068 = vmax.f32 %v1939, 0.0
          %v2069 = vpack.c.bf16 %v1942, %v1941
          %v2070 = vpack.c.bf16 %v1944, %v1943
          %v2071 = vpack.c.bf16 %v1946, %v1945
          %v2072 = vpack.c.bf16 %v1948, %v1947
          %v2073 = vpack.c.bf16 %v1950, %v1949
          %v2074 = vpack.c.bf16 %v1952, %v1951
          %v2075 = vpack.c.bf16 %v1954, %v1953
          %v2076 = vpack.c.bf16 %v1956, %v1955
          %v2077 = vpack.c.bf16 %v1958, %v1957
          %v2078 = vpack.c.bf16 %v1960, %v1959
          %v2079 = vpack.c.bf16 %v1962, %v1961
          %v2080 = vpack.c.bf16 %v1964, %v1963
          %v2081 = vpack.c.bf16 %v1966, %v1965
          %v2082 = vpack.c.bf16 %v1968, %v1967
          %v2083 = vpack.c.bf16 %v1970, %v1969
          %v2084 = vpack.c.bf16 %v1972, %v1971
          %v2085 = vpack.c.bf16 %v1974, %v1973
          %v2086 = vpack.c.bf16 %v1976, %v1975
          %v2087 = vpack.c.bf16 %v1978, %v1977
          %v2088 = vpack.c.bf16 %v1980, %v1979
          %v2089 = vpack.c.bf16 %v1982, %v1981
          %v2090 = vpack.c.bf16 %v1984, %v1983
          %v2091 = vpack.c.bf16 %v1986, %v1985
          %v2092 = vpack.c.bf16 %v1988, %v1987
          %v2093 = vpack.c.bf16 %v1990, %v1989
          %v2094 = vpack.c.bf16 %v1992, %v1991
          %v2095 = vpack.c.bf16 %v1994, %v1993
          %v2096 = vpack.c.bf16 %v1996, %v1995
          %v2097 = vpack.c.bf16 %v1998, %v1997
          %v2098 = vpack.c.bf16 %v2000, %v1999
          %v2099 = vpack.c.bf16 %v2002, %v2001
          %v2100 = vpack.c.bf16 %v2004, %v2003
          %v2101 = vpack.c.bf16 %v2006, %v2005
          %v2102 = vpack.c.bf16 %v2008, %v2007
          %v2103 = vpack.c.bf16 %v2010, %v2009
          %v2104 = vpack.c.bf16 %v2012, %v2011
          %v2105 = vpack.c.bf16 %v2014, %v2013
          %v2106 = vpack.c.bf16 %v2016, %v2015
          %v2107 = vpack.c.bf16 %v2018, %v2017
          %v2108 = vpack.c.bf16 %v2020, %v2019
          %v2109 = vpack.c.bf16 %v2022, %v2021
          %v2110 = vpack.c.bf16 %v2024, %v2023
          %v2111 = vpack.c.bf16 %v2026, %v2025
          %v2112 = vpack.c.bf16 %v2028, %v2027
          %v2113 = vpack.c.bf16 %v2030, %v2029
          %v2114 = vpack.c.bf16 %v2032, %v2031
          %v2115 = vpack.c.bf16 %v2034, %v2033
          %v2116 = vpack.c.bf16 %v2036, %v2035
          %v2117 = vpack.c.bf16 %v2038, %v2037
          %v2118 = vpack.c.bf16 %v2040, %v2039
          %v2119 = vpack.c.bf16 %v2042, %v2041
          %v2120 = vpack.c.bf16 %v2044, %v2043
          %v2121 = vpack.c.bf16 %v2046, %v2045
          %v2122 = vpack.c.bf16 %v2048, %v2047
          %v2123 = vpack.c.bf16 %v2050, %v2049
          %v2124 = vpack.c.bf16 %v2052, %v2051
          %v2125 = vpack.c.bf16 %v2054, %v2053
          %v2126 = vpack.c.bf16 %v2056, %v2055
          %v2127 = vpack.c.bf16 %v2058, %v2057
          %v2128 = vpack.c.bf16 %v2060, %v2059
          %v2129 = vpack.c.bf16 %v2062, %v2061
          %v2130 = vpack.c.bf16 %v2064, %v2063
          %v2131 = vpack.c.bf16 %v2066, %v2065
          %v2132 = vpack.c.bf16 %v2068, %v2067
          %2133 = vst [vmem:[%s282] sm:$0xff] %v2069
          %2134 = vst [vmem:[%s282 + $0x8] sm:$0xff] %v2070
          %2135 = vst [vmem:[%s282 + $0x10] sm:$0xff] %v2071
          %2136 = vst [vmem:[%s282 + $0x18] sm:$0xff] %v2072
          %2137 = vst [vmem:[%s282 + $0x20] sm:$0xff] %v2073
          %2138 = vst [vmem:[%s282 + $0x28] sm:$0xff] %v2074
          %2139 = vst [vmem:[%s282 + $0x30] sm:$0xff] %v2075
          %2140 = vst [vmem:[%s282 + $0x38] sm:$0xff] %v2076
          %2141 = vst [vmem:[%s282 + $0x40] sm:$0xff] %v2077
          %2142 = vst [vmem:[%s282 + $0x48] sm:$0xff] %v2078
          %2143 = vst [vmem:[%s282 + $0x50] sm:$0xff] %v2079
          %2144 = vst [vmem:[%s282 + $0x58] sm:$0xff] %v2080
          %2145 = vst [vmem:[%s282 + $0x60] sm:$0xff] %v2081
          %2146 = vst [vmem:[%s282 + $0x68] sm:$0xff] %v2082
          %2147 = vst [vmem:[%s282 + $0x70] sm:$0xff] %v2083
          %2148 = vst [vmem:[%s282 + $0x78] sm:$0xff] %v2084
          %2149 = vst [vmem:[%s282 + $0x80] sm:$0xff] %v2085
          %2150 = vst [vmem:[%s282 + $0x88] sm:$0xff] %v2086
          %2151 = vst [vmem:[%s282 + $0x90] sm:$0xff] %v2087
          %2152 = vst [vmem:[%s282 + $0x98] sm:$0xff] %v2088
          %2153 = vst [vmem:[%s282 + $0xa0] sm:$0xff] %v2089
          %2154 = vst [vmem:[%s282 + $0xa8] sm:$0xff] %v2090
          %2155 = vst [vmem:[%s282 + $0xb0] sm:$0xff] %v2091
          %2156 = vst [vmem:[%s282 + $0xb8] sm:$0xff] %v2092
          %2157 = vst [vmem:[%s282 + $0xc0] sm:$0xff] %v2093
          %2158 = vst [vmem:[%s282 + $0xc8] sm:$0xff] %v2094
          %2159 = vst [vmem:[%s282 + $0xd0] sm:$0xff] %v2095
          %2160 = vst [vmem:[%s282 + $0xd8] sm:$0xff] %v2096
          %2161 = vst [vmem:[%s282 + $0xe0] sm:$0xff] %v2097
          %2162 = vst [vmem:[%s282 + $0xe8] sm:$0xff] %v2098
          %2163 = vst [vmem:[%s282 + $0xf0] sm:$0xff] %v2099
          %2164 = vst [vmem:[%s282 + $0xf8] sm:$0xff] %v2100
          %2165 = vst [vmem:[%s282 + $0x100] sm:$0xff] %v2101
          %2166 = vst [vmem:[%s282 + $0x108] sm:$0xff] %v2102
          %2167 = vst [vmem:[%s282 + $0x110] sm:$0xff] %v2103
          %2168 = vst [vmem:[%s282 + $0x118] sm:$0xff] %v2104
          %2169 = vst [vmem:[%s282 + $0x120] sm:$0xff] %v2105
          %2170 = vst [vmem:[%s282 + $0x128] sm:$0xff] %v2106
          %2171 = vst [vmem:[%s282 + $0x130] sm:$0xff] %v2107
          %2172 = vst [vmem:[%s282 + $0x138] sm:$0xff] %v2108
          %2173 = vst [vmem:[%s282 + $0x140] sm:$0xff] %v2109
          %2174 = vst [vmem:[%s282 + $0x148] sm:$0xff] %v2110
          %2175 = vst [vmem:[%s282 + $0x150] sm:$0xff] %v2111
          %2176 = vst [vmem:[%s282 + $0x158] sm:$0xff] %v2112
          %2177 = vst [vmem:[%s282 + $0x160] sm:$0xff] %v2113
          %2178 = vst [vmem:[%s282 + $0x168] sm:$0xff] %v2114
          %2179 = vst [vmem:[%s282 + $0x170] sm:$0xff] %v2115
          %2180 = vst [vmem:[%s282 + $0x178] sm:$0xff] %v2116
          %2181 = vst [vmem:[%s282 + $0x180] sm:$0xff] %v2117
          %2182 = vst [vmem:[%s282 + $0x188] sm:$0xff] %v2118
          %2183 = vst [vmem:[%s282 + $0x190] sm:$0xff] %v2119
          %2184 = vst [vmem:[%s282 + $0x198] sm:$0xff] %v2120
          %2185 = vst [vmem:[%s282 + $0x1a0] sm:$0xff] %v2121
          %2186 = vst [vmem:[%s282 + $0x1a8] sm:$0xff] %v2122
          %2187 = vst [vmem:[%s282 + $0x1b0] sm:$0xff] %v2123
          %2188 = vst [vmem:[%s282 + $0x1b8] sm:$0xff] %v2124
          %2189 = vst [vmem:[%s282 + $0x1c0] sm:$0xff] %v2125
          %2190 = vst [vmem:[%s282 + $0x1c8] sm:$0xff] %v2126
          %2191 = vst [vmem:[%s282 + $0x1d0] sm:$0xff] %v2127
          %2192 = vst [vmem:[%s282 + $0x1d8] sm:$0xff] %v2128
          %2193 = vst [vmem:[%s282 + $0x1e0] sm:$0xff] %v2129
          %2194 = vst [vmem:[%s282 + $0x1e8] sm:$0xff] %v2130
          %2195 = vst [vmem:[%s282 + $0x1f0] sm:$0xff] %v2131
          %2196 = vst [vmem:[%s282 + $0x1f8] sm:$0xff] %v2132
        $region60: #{tpu_custom_call.1} parent=35 // pred_fallthru
          _
        %s2197 = sand.u32 %s134, 1
        %s2198 = scalar_lea.sflag [#allocation5], %s2197
        %s2199 = sand.u32 %s134, 1
        %s2200 = smul.addr %s2199, 512
        %s2201 = scalar_lea.vmem [#allocation11], %s2200
        // Predicated region
        $region61: #{tpu_custom_call.1} parent=35 // pred_check
          %p2202 = pneg %p144
        $region62: #{tpu_custom_call.1} parent=35 // pred_check_branch
          %2204 = sbr.rel (%p2202) target = $region64
        $region63: #{tpu_custom_call.1} parent=35 // pred_region
          %s2205 = smul.u32 64, %s27
          %2207 = vsyncadd %s2198, 0
          %s2208 = smul.addr %s2205, 2
          %s2209 = smul.addr %s2208, 4
          %s2210 = scalar_lea.hbm %s4, %s2209
          %s2211 = sshll.u32 %s2201, 4
          %s2212 = int_to_ptr.vmem [resolvable:$true] %s2211
          %s2213 = sshll.u32 %s2210, 4
          %s2214 = int_to_ptr.hbm [resolvable:$true] %s2213
          %2219 = dma.vmem_to_hbm [thread:$0]  %s2212, 8192, %s2214, %s2198, 128, 128, 8
        $region64: #{tpu_custom_call.1} parent=35 // pred_fallthru
          _
      $region36: #{tpu_custom_call.1} parent=5 // pred_fallthru
        _
      %p2220 = scmp.le.s32.totalorder 2, %s18
      // Predicated region
      $region65: #{tpu_custom_call.1} parent=5 // pred_check
        %p2221 = pneg %p2220
      $region66: #{tpu_custom_call.1} parent=5 // pred_check_branch
        %2223 = sbr.rel (%p2221) target = $region68
      $region67: #{tpu_custom_call.1} parent=5 // pred_region
        %s2224 = ssub.s32 %s18, 2
        // Predicated region
        $region69: #{tpu_custom_call.1} parent=67 // pred_check
          %p2225 = pneg %p150
        $region70: #{tpu_custom_call.1} parent=67 // pred_check_branch
          %2227 = sbr.rel (%p2225) target = $region72
        $region71: #{tpu_custom_call.1} parent=67 // pred_region
          %s2228 = sand.u32 %s135, 1
          %s2229 = scalar_lea.sflag [#allocation5], %s2228
          %s2230 = sand.u32 %s135, 1
          %s2231 = smul.addr %s2230, 512
          %s2232 = scalar_lea.vmem [#allocation11], %s2231
          %2234 = dma.done %s2229, 8192
        $region72: #{tpu_custom_call.1} parent=67 // pred_fallthru
          _
      $region68: #{tpu_custom_call.1} parent=5 // pred_fallthru
        _
    $region6: #{tpu_custom_call.1} parent=1 // loop_footer
      %s22 = sadd.s32 1, %s18
    $region7: #{tpu_custom_call.1} parent=1 // loop_footer_branch
      %17 = sbr.rel target = $region3
    $region8: #{tpu_custom_call.1} parent=1 // loop_exit
      _
    %2235 = vsyncpa [#allocation4], 1
    %s2236 = scalar_lea.sflag [#allocation4], 1
    %2237 = vsyncpa %s2236, 1
    %2238 = vsyncpa [#allocation7], 1
    %2239 = vsyncpa [#allocation10], 1
    %2240 = vsyncpa [#allocation5], 1
    %s2241 = scalar_lea.sflag [#allocation5], 1
    %2242 = vsyncpa %s2241, 1

</llo_original>
